<compile_context>
chip_gen: v6e
topology: v6e:2x2x1
jax: 0.10.0
libtpu: 0.0.40
codegen_flags: <defaults>
</compile_context>

<pallas_src>
import functools

import jax
import jax.numpy as jnp
import numpy as np
from jax import lax
from jax.experimental import pallas as pl
from jax.experimental.pallas import tpu as pltpu

N_FEATURES = 8        # d  (dims[0])
HIDDEN = 16           # m1 (dims[1]); dims = [8, 16, 1]
BATCH = 32
EPS = 0.01            # nonlinear_clamp -> LayerNorm eps
_HIGHEST = jax.lax.Precision.HIGHEST


def notears_mlp_kernel(xT_ref, wdag_ref, gcat_ref, gmean_ref, oT_ref, *, eps, d):
    xT = xT_ref[...]            # (d, tb)      f32, batch on lanes
    w_dag = wdag_ref[...]       # (d*m1, d)    torch Linear weight, native layout
    g_cat = gcat_ref[...]       # (2d, d*m1)   [G_mean^T ; G_c^T]
    g_mean = gmean_ref[...]     # (d, d*m1)    (1/m1) * group indicator, transposed

    # dag_layer (nn.Linear, no bias), transposed: h^T = W_dag @ x^T
    hT = jnp.dot(w_dag, xT, preferred_element_type=jnp.float32,
                 precision=_HIGHEST)                             # (d*m1, tb)

    # Center sigmoid at 0.5: variance is shift-invariant and G_c has zero column-sums
    # per group, so outputs are unchanged but the E[s^2]-mean^2 cancellation vanishes.
    t = jax.nn.sigmoid(hT) - jnp.float32(0.5)                    # (d*m1, tb)

    # One matmul -> per-group mean (rows :d) and centered, W_loc-weighted sum (rows d:)
    stats = jnp.dot(g_cat, t, preferred_element_type=jnp.float32,
                    precision=_HIGHEST)                          # (2d, tb)
    mean_t = stats[:d, :]                                        # (d, tb)
    csum = stats[d:, :]                                          # (d, tb)

    ssq = jnp.dot(g_mean, t * t, preferred_element_type=jnp.float32,
                  precision=_HIGHEST)                            # (d, tb)

    var = ssq - mean_t * mean_t                                  # biased group variance
    inv_std = lax.rsqrt(var + jnp.float32(eps))                  # LayerNorm: /sqrt(var+eps)

    # LocallyConnected(d, m1, 1) + squeeze, fused:  out^T = inv_std * csum
    oT_ref[...] = (inv_std * csum).astype(oT_ref.dtype)


def _round_up(x, m):
    return -(-x // m) * m


def _pick_tile_b(n, d, m1, vmem_budget_bytes=12 * 1024 * 1024):
    """Largest lane-aligned batch tile that keeps live f32 intermediates under budget."""
    dm = d * m1
    # Per batch-column: h/t and t*t slabs (dm rows each) + stats/out/x double buffers.
    per_col = 4 * (2 * dm + 10 * d)
    cap = max(128, min(4096, (vmem_budget_bytes // per_col) // 128 * 128))
    n128 = _round_up(n, 128)
    if n128 <= cap:
        if n128 >= 1024:
            # Give v7x's two TensorCores work only when each step carries >=512 rows.
            return _round_up(n128 // 2, 128)
        return n128          # single fat step on 1-TC chips / small batches
    return cap


def notears_mlp_forward(x, w_dag, w_loc, *, eps=EPS):
    """x: [n, d] f32; w_dag: [d*m1, d] (torch Linear layout); w_loc: [d, m1, 1]."""
    n, d = x.shape
    m1 = w_loc.shape[1]
    dm = d * m1
    assert w_dag.shape == (dm, d) and w_loc.shape == (d, m1, 1)

    tb = _pick_tile_b(n, d, m1)
    n_pad = _round_up(n, tb)

    # Batch on lanes: x^T is (d, n_pad); padded columns are zeros (h=0 -> t=0, no NaNs)
    # and are sliced off after the call.
    xT = jnp.transpose(x)
    if n_pad != n:
        xT = jnp.pad(xT, ((0, 0), (0, n_pad - n)))

    # Constant operands, built once on the host (pure numpy/XLA glue).
    w_flat = w_loc[..., 0].reshape(dm)                               # row-major over (j, k)
    w_sum = jnp.sum(w_loc[..., 0], axis=1)                           # (d,)
    group = np.repeat(np.arange(d), m1)                              # group id of each unit
    g_ind = (group[:, None] == np.arange(d)[None, :]).astype(np.float32)   # (dm, d)
    g_mean = jnp.asarray(g_ind) / jnp.float32(m1)                    # (dm, d), folds 1/m1
    g_c = jnp.asarray(g_ind) * w_flat[:, None] - g_mean * w_sum[None, :]   # (dm, d)
    g_mean_T = jnp.transpose(g_mean)                                 # (d, dm)
    g_cat_T = jnp.concatenate([g_mean_T, jnp.transpose(g_c)], axis=0)  # (2d, dm)

    kernel = functools.partial(notears_mlp_kernel, eps=float(eps), d=d)

    outT = pl.pallas_call(
        kernel,
        out_shape=jax.ShapeDtypeStruct((d, n_pad), x.dtype),
        grid_spec=pltpu.PrefetchScalarGridSpec(
            num_scalar_prefetch=0,
            grid=(n_pad // tb,),
            in_specs=[
                pl.BlockSpec((d, tb), lambda i: (0, i)),      # x^T tile (lane-dense)
                pl.BlockSpec((dm, d), lambda i: (0, 0)),      # W_dag     (grid-invariant)
                pl.BlockSpec((2 * d, dm), lambda i: (0, 0)),  # [G_mean^T; G_c^T]
                pl.BlockSpec((d, dm), lambda i: (0, 0)),      # G_mean^T
            ],
            out_specs=pl.BlockSpec((d, tb), lambda i: (0, i)),  # out^T tile (lane-dense)
        ),
        compiler_params=pltpu.CompilerParams(
            dimension_semantics=("parallel",),
            vmem_limit_bytes=32 * 1024 * 1024,
        ),
    )(xT, w_dag, g_cat_T, g_mean_T)

    return jnp.transpose(outT)[:n, :]


def notears_mlp_reference(x, w_dag, w_loc, *, eps=EPS):
    n, d = x.shape
    m1 = w_loc.shape[1]
    h = jnp.dot(x, w_dag.T, precision=_HIGHEST)
    h = h.reshape(n, d, m1)
    s = jax.nn.sigmoid(h)
    mean = jnp.mean(s, axis=-1, keepdims=True)
    var = jnp.mean((s - mean) ** 2, axis=-1, keepdims=True)
    sn = (s - mean) / jnp.sqrt(var + eps)
    out = jnp.sum(sn * w_loc[..., 0][None, :, :], axis=-1)
    return out


if __name__ == "__main__":
    key = jax.random.PRNGKey(0)
    kx, kw, kl = jax.random.split(key, 3)

    x = jax.random.normal(kx, (BATCH, N_FEATURES), dtype=jnp.float32)
    # NOTE: the module zero-inits dag_layer.weight; use a deterministic random init
    # here so the synthetic kernel output is non-trivial.
    w_dag = 0.1 * jax.random.normal(kw, (N_FEATURES * HIDDEN, N_FEATURES),
                                    dtype=jnp.float32)
    bound = 1.0 / np.sqrt(HIDDEN)
    w_loc = jax.random.uniform(kl, (N_FEATURES, HIDDEN, 1), dtype=jnp.float32,
                               minval=-bound, maxval=bound)

    out = jax.block_until_ready(notears_mlp_forward(x, w_dag, w_loc))

    ref = notears_mlp_reference(x, w_dag, w_loc)
    assert out.shape == (BATCH, N_FEATURES)
    assert np.allclose(np.asarray(out), np.asarray(ref), atol=1e-4, rtol=1e-4)

    print("KERNEL_OK")
</pallas_src>

<mosaic_0001>
module attributes {stable_mosaic.version = 11 : i64} {
  func.func @notears_mlp_kernel(%arg0: i32, %arg1: memref<8x128xf32, #tpu.memory_space<vmem>>, %arg2: memref<128x8xf32, #tpu.memory_space<vmem>>, %arg3: memref<16x128xf32, #tpu.memory_space<vmem>>, %arg4: memref<8x128xf32, #tpu.memory_space<vmem>>, %arg5: memref<8x128xf32, #tpu.memory_space<vmem>>) attributes {dimension_semantics = [#tpu.dimension_semantics<parallel>], iteration_bounds = array<i64: 1>, scalar_prefetch = 0 : i64, scratch_operands = 0 : i64, tpu.core_type = #tpu.core_type<tc>, window_params = [{transform_indices = @transform_0, window_bounds = array<i64: 8, 128>}, {pipeline_mode = #tpu.pipeline_mode<synchronous>, transform_indices = @transform_1, window_bounds = array<i64: 128, 8>}, {pipeline_mode = #tpu.pipeline_mode<synchronous>, transform_indices = @transform_2, window_bounds = array<i64: 16, 128>}, {pipeline_mode = #tpu.pipeline_mode<synchronous>, transform_indices = @transform_3, window_bounds = array<i64: 8, 128>}, {transform_indices = @transform_4, window_bounds = array<i64: 8, 128>}]} {
    %c0 = arith.constant 0 : index
    %c0_0 = arith.constant 0 : index
    %0 = vector.load %arg1[%c0, %c0_0] : memref<8x128xf32, #tpu.memory_space<vmem>>, vector<8x128xf32>
    %c0_1 = arith.constant 0 : index
    %c0_2 = arith.constant 0 : index
    %1 = vector.load %arg2[%c0_1, %c0_2] : memref<128x8xf32, #tpu.memory_space<vmem>>, vector<128x8xf32>
    %c0_3 = arith.constant 0 : index
    %c0_4 = arith.constant 0 : index
    %2 = vector.load %arg3[%c0_3, %c0_4] : memref<16x128xf32, #tpu.memory_space<vmem>>, vector<16x128xf32>
    %c0_5 = arith.constant 0 : index
    %c0_6 = arith.constant 0 : index
    %3 = vector.load %arg4[%c0_5, %c0_6] : memref<8x128xf32, #tpu.memory_space<vmem>>, vector<8x128xf32>
    %cst = arith.constant dense<0.000000e+00> : vector<128x128xf32>
    %4 = tpu.matmul %1, %0, %cst {dimension_numbers = #tpu.dot_dimension_numbers<[1], [0], [0], [1], [0, 0, 1, 1], [], []>, precision = #tpu.contract_precision<fp32>} : vector<128x8xf32>, vector<8x128xf32>, vector<128x128xf32> -> vector<128x128xf32>
    %5 = arith.negf %4 : vector<128x128xf32>
    %6 = math.exp %5 : vector<128x128xf32>
    %cst_7 = arith.constant 1.000000e+00 : f32
    %7 = vector.broadcast %cst_7 : f32 to vector<128x128xf32>
    %8 = arith.addf %7, %6 : vector<128x128xf32>
    %9 = arith.divf %7, %8 : vector<128x128xf32>
    %cst_8 = arith.constant 5.000000e-01 : f32
    %10 = vector.broadcast %cst_8 : f32 to vector<128x128xf32>
    %11 = arith.subf %9, %10 : vector<128x128xf32>
    %cst_9 = arith.constant dense<0.000000e+00> : vector<16x128xf32>
    %12 = tpu.matmul %2, %11, %cst_9 {dimension_numbers = #tpu.dot_dimension_numbers<[1], [0], [0], [1], [0, 0, 1, 1], [], []>, precision = #tpu.contract_precision<fp32>} : vector<16x128xf32>, vector<128x128xf32>, vector<16x128xf32> -> vector<16x128xf32>
    %13 = vector.extract_strided_slice %12 {offsets = [0, 0], sizes = [8, 128], strides = [1, 1]} : vector<16x128xf32> to vector<8x128xf32>
    %14 = vector.extract_strided_slice %12 {offsets = [8, 0], sizes = [8, 128], strides = [1, 1]} : vector<16x128xf32> to vector<8x128xf32>
    %15 = arith.mulf %11, %11 : vector<128x128xf32>
    %cst_10 = arith.constant dense<0.000000e+00> : vector<8x128xf32>
    %16 = tpu.matmul %3, %15, %cst_10 {dimension_numbers = #tpu.dot_dimension_numbers<[1], [0], [0], [1], [0, 0, 1, 1], [], []>, precision = #tpu.contract_precision<fp32>} : vector<8x128xf32>, vector<128x128xf32>, vector<8x128xf32> -> vector<8x128xf32>
    %17 = arith.mulf %13, %13 : vector<8x128xf32>
    %18 = arith.subf %16, %17 : vector<8x128xf32>
    %cst_11 = arith.constant 0.00999999977 : f32
    %19 = vector.broadcast %cst_11 : f32 to vector<8x128xf32>
    %20 = arith.addf %18, %19 : vector<8x128xf32>
    %21 = math.rsqrt %20 : vector<8x128xf32>
    %22 = arith.mulf %21, %14 : vector<8x128xf32>
    %c0_12 = arith.constant 0 : index
    %c0_13 = arith.constant 0 : index
    %23 = vector.load %arg5[%c0_12, %c0_13] : memref<8x128xf32, #tpu.memory_space<vmem>>, vector<8x128xf32>
    tpu.vector_store %arg5[%c0_12, %c0_13], %22 {strides = array<i32>} : memref<8x128xf32, #tpu.memory_space<vmem>>, vector<8x128xf32>,
    return
  }
  func.func @transform_0(%arg0: i32) -> (i32, i32) {
    %c0_i32 = arith.constant 0 : i32
    %c0_i32_0 = arith.constant 0 : i32
    return %c0_i32, %arg0 : i32, i32
  }
  func.func @transform_1(%arg0: i32) -> (i32, i32) {
    %c0_i32 = arith.constant 0 : i32
    %c0_i32_0 = arith.constant 0 : i32
    %c0_i32_1 = arith.constant 0 : i32
    return %c0_i32, %c0_i32_0 : i32, i32
  }
  func.func @transform_2(%arg0: i32) -> (i32, i32) {
    %c0_i32 = arith.constant 0 : i32
    %c0_i32_0 = arith.constant 0 : i32
    %c0_i32_1 = arith.constant 0 : i32
    return %c0_i32, %c0_i32_0 : i32, i32
  }
  func.func @transform_3(%arg0: i32) -> (i32, i32) {
    %c0_i32 = arith.constant 0 : i32
    %c0_i32_0 = arith.constant 0 : i32
    %c0_i32_1 = arith.constant 0 : i32
    return %c0_i32, %c0_i32_0 : i32, i32
  }
  func.func @transform_4(%arg0: i32) -> (i32, i32) {
    %c0_i32 = arith.constant 0 : i32
    %c0_i32_0 = arith.constant 0 : i32
    return %c0_i32, %arg0 : i32, i32
  }
}

</mosaic_0001>

<llo_original>
// kernel: tpu_custom_call.1
$region0: #{tpu_custom_call.1}
  #allocation0 [shape = 'u32[]', space=smem, size = 0x4, offset = 0x4, fixed_abs, tag = 'smem constant byte address 0x4 - core index']
  #allocation1 [shape = 'u32[144,128]{1,0:T(1,128)}', space=vmem, size = 0x12000, scoped, tag = 'internal scratch']
  %s0 = inlined_call_operand.vmem [shape: f32[8,128], index: 0, kind: input, shape index: {}]
  %s1 = inlined_call_operand.vmem [shape: f32[128,8], index: 1, kind: input, shape index: {}]
  %s2 = inlined_call_operand.vmem [shape: f32[16,128], index: 2, kind: input, shape index: {}]
  %s3 = inlined_call_operand.vmem [shape: f32[8,128], index: 3, kind: input, shape index: {}]
  %s4 = inlined_call_operand.hbm [shape: f32[8,128], index: 4, kind: output, shape index: {}]
  %s5 = sld [smem:[#allocation0]]
  $region26: #{tpu_custom_call.1} parent=0
    _
  %s7 = ssub.s32 1, %s5
  %s8 = scalar_select 0, %s7, %s5
  $region1: #{tpu_custom_call.1} parent=0
    #allocation2 [shape = 'u8[4096]{0}', space=vmem, size = 0x1000, scoped, tag = 'output window, operand 0, single buffered']
    #allocation3 [shape = 's32[1]{0}', space=sflag, size = 0x4, scoped, tag = 'scoped memory for tpu_custom_call.1']
    %9 = vsyncpa [#allocation3], 0
    // Predicated region
    $region2: #{tpu_custom_call.1} parent=1 // pred_check
      _
    $region3: #{tpu_custom_call.1} parent=1 // pred_check_branch
      %11 = sbr.rel (0) target = $region5
    $region4: #{tpu_custom_call.1} parent=1 // pred_region
      _
    $region5: #{tpu_custom_call.1} parent=1 // pred_fallthru
      _
    // Predicated region
    $region6: #{tpu_custom_call.1} parent=1 // pred_check
      _
    $region7: #{tpu_custom_call.1} parent=1 // pred_check_branch
      %13 = sbr.rel (0) target = $region9
    $region8: #{tpu_custom_call.1} parent=1 // pred_region
      _
    $region9: #{tpu_custom_call.1} parent=1 // pred_fallthru
      _
    // Predicated region
    $region10: #{tpu_custom_call.1} parent=1 // pred_check
      _
    $region11: #{tpu_custom_call.1} parent=1 // pred_check_branch
      %15 = sbr.rel (0) target = $region13
    $region12: #{tpu_custom_call.1} parent=1 // pred_region
      _
    $region13: #{tpu_custom_call.1} parent=1 // pred_fallthru
      _
    // Predicated region
    $region14: #{tpu_custom_call.1} parent=1 // pred_check
      _
    $region15: #{tpu_custom_call.1} parent=1 // pred_check_branch
      %17 = sbr.rel (0) target = $region17
    $region16: #{tpu_custom_call.1} parent=1 // pred_region
      _
    $region17: #{tpu_custom_call.1} parent=1 // pred_fallthru
      _
    %v18 = vld [vmem:[%s0] sm:$0xff]
    %v19 = vld [vmem:[%s1] sm:$0xff]
    %v20 = vld [vmem:[%s1 + $0x8] sm:$0xff]
    %v21 = vld [vmem:[%s1 + $0x10] sm:$0xff]
    %v22 = vld [vmem:[%s1 + $0x18] sm:$0xff]
    %v23 = vld [vmem:[%s1 + $0x20] sm:$0xff]
    %v24 = vld [vmem:[%s1 + $0x28] sm:$0xff]
    %v25 = vld [vmem:[%s1 + $0x30] sm:$0xff]
    %v26 = vld [vmem:[%s1 + $0x38] sm:$0xff]
    %v27 = vld [vmem:[%s1 + $0x40] sm:$0xff]
    %v28 = vld [vmem:[%s1 + $0x48] sm:$0xff]
    %v29 = vld [vmem:[%s1 + $0x50] sm:$0xff]
    %v30 = vld [vmem:[%s1 + $0x58] sm:$0xff]
    %v31 = vld [vmem:[%s1 + $0x60] sm:$0xff]
    %v32 = vld [vmem:[%s1 + $0x68] sm:$0xff]
    %v33 = vld [vmem:[%s1 + $0x70] sm:$0xff]
    %v34 = vld [vmem:[%s1 + $0x78] sm:$0xff]
    %v35 = vld [vmem:[%s2] sm:$0xff]
    %v36 = vld [vmem:[%s2 + $0x8] sm:$0xff]
    %v37 = vld [vmem:[%s3] sm:$0xff]
    %vm38 = vcmask 64512
    %v40 = vsel %vm38, %v19, 0
    %v43 = vsel %vm38, %v20, 0
    %v46 = vsel %vm38, %v21, 0
    %v49 = vsel %vm38, %v22, 0
    %v52 = vsel %vm38, %v23, 0
    %v55 = vsel %vm38, %v24, 0
    %v58 = vsel %vm38, %v25, 0
    %v61 = vsel %vm38, %v26, 0
    %v64 = vsel %vm38, %v27, 0
    %v67 = vsel %vm38, %v28, 0
    %v70 = vsel %vm38, %v29, 0
    %v73 = vsel %vm38, %v30, 0
    %v76 = vsel %vm38, %v31, 0
    %v79 = vsel %vm38, %v32, 0
    %v82 = vsel %vm38, %v33, 0
    %v85 = vsel %vm38, %v34, 0
    %87 = vmatprep.subr.mxu0 0.0
    %88 = vmatpush1.msra.mxu0 0.0
    %89 = vmatprep.subr.mxu0 0.0
    %90 = vmatpush1.msra.mxu0 0.0
    %91 = vmatprep.subr.mxu0 0.0
    %92 = vmatpush1.msra.mxu0 0.0
    %93 = vmatprep.subr.mxu0 0.0
    %94 = vmatpush1.msra.mxu0 0.0
    %95 = vmatprep.subr.mxu0 0.0
    %96 = vmatpush1.msra.mxu0 0.0
    %97 = vmatprep.subr.mxu0 0.0
    %98 = vmatpush1.msra.mxu0 0.0
    %99 = vmatprep.subr.mxu0 0.0
    %100 = vmatpush1.msra.mxu0 0.0
    %101 = vmatprep.subr.mxu0 0.0
    %102 = vmatpush1.msra.mxu0 0.0
    %103 = vmatprep.subr.mxu0 0.0
    %104 = vmatpush1.msra.mxu0 0.0
    %105 = vmatprep.subr.mxu0 0.0
    %106 = vmatpush1.msra.mxu0 0.0
    %107 = vmatprep.subr.mxu0 0.0
    %108 = vmatpush1.msra.mxu0 0.0
    %109 = vmatprep.subr.mxu0 0.0
    %110 = vmatpush1.msra.mxu0 0.0
    %111 = vmatprep.subr.mxu0 0.0
    %112 = vmatpush1.msra.mxu0 0.0
    %113 = vmatprep.subr.mxu0 0.0
    %114 = vmatpush1.msra.mxu0 0.0
    %115 = vmatprep.subr.mxu0 0.0
    %116 = vmatpush1.msra.mxu0 0.0
    %117 = vmatprep.subr.mxu0 0.0
    %v118 = vand.u32 %v18, 4294901760
    %119 = vmatpush1.msra.mxu0 %v118
    %120 = vmatprep.subr.mxu0 0.0
    %121 = vmatpush2.msra.mxu0 0.0
    %122 = vmatprep.subr.mxu0 0.0
    %123 = vmatpush2.msra.mxu0 0.0
    %124 = vmatprep.subr.mxu0 0.0
    %125 = vmatpush2.msra.mxu0 0.0
    %126 = vmatprep.subr.mxu0 0.0
    %127 = vmatpush2.msra.mxu0 0.0
    %128 = vmatprep.subr.mxu0 0.0
    %129 = vmatpush2.msra.mxu0 0.0
    %130 = vmatprep.subr.mxu0 0.0
    %131 = vmatpush2.msra.mxu0 0.0
    %132 = vmatprep.subr.mxu0 0.0
    %133 = vmatpush2.msra.mxu0 0.0
    %134 = vmatprep.subr.mxu0 0.0
    %135 = vmatpush2.msra.mxu0 0.0
    %136 = vmatprep.subr.mxu0 0.0
    %137 = vmatpush2.msra.mxu0 0.0
    %138 = vmatprep.subr.mxu0 0.0
    %139 = vmatpush2.msra.mxu0 0.0
    %140 = vmatprep.subr.mxu0 0.0
    %141 = vmatpush2.msra.mxu0 0.0
    %142 = vmatprep.subr.mxu0 0.0
    %143 = vmatpush2.msra.mxu0 0.0
    %144 = vmatprep.subr.mxu0 0.0
    %145 = vmatpush2.msra.mxu0 0.0
    %146 = vmatprep.subr.mxu0 0.0
    %147 = vmatpush2.msra.mxu0 0.0
    %148 = vmatprep.subr.mxu0 0.0
    %149 = vmatpush2.msra.mxu0 0.0
    %150 = vmatprep.subr.mxu0 0.0
    %151 = vmatpush2.msra.mxu0 0.0
    %152 = vmatprep.mubr.f32.mxu0 0.0
    %v153 = vand.u32 %v40, 4294901760
    %v154 = vsub.f32 %v40, %v153
    %v155 = vand.u32 %v154, 4294901760
    %v156 = vsub.f32 %v154, %v155
    %v157 = vand.u32 %v156, 4294901760
    %158 = vmatmul.mubr.f32.gmra.mxu0 %v157
    %v159 = vpop.f32.mrf.mxu0
    %v160 = vadd.f32 0.0, %v159
    %v161 = vpop.f32.mrf.mxu0
    %162 = vmatprep.mubr.f32.mxu0 0.0
    %v163 = vand.u32 %v43, 4294901760
    %v164 = vsub.f32 %v43, %v163
    %v165 = vand.u32 %v164, 4294901760
    %v166 = vsub.f32 %v164, %v165
    %v167 = vand.u32 %v166, 4294901760
    %168 = vmatmul.mubr.f32.gmra.mxu0 %v167
    %v169 = vpop.f32.mrf.mxu0
    %v170 = vadd.f32 0.0, %v169
    %v171 = vpop.f32.mrf.mxu0
    %172 = vmatprep.mubr.f32.mxu0 0.0
    %v173 = vand.u32 %v46, 4294901760
    %v174 = vsub.f32 %v46, %v173
    %v175 = vand.u32 %v174, 4294901760
    %v176 = vsub.f32 %v174, %v175
    %v177 = vand.u32 %v176, 4294901760
    %178 = vmatmul.mubr.f32.gmra.mxu0 %v177
    %v179 = vpop.f32.mrf.mxu0
    %v180 = vadd.f32 0.0, %v179
    %v181 = vpop.f32.mrf.mxu0
    %182 = vmatprep.mubr.f32.mxu0 0.0
    %v183 = vand.u32 %v49, 4294901760
    %v184 = vsub.f32 %v49, %v183
    %v185 = vand.u32 %v184, 4294901760
    %v186 = vsub.f32 %v184, %v185
    %v187 = vand.u32 %v186, 4294901760
    %188 = vmatmul.mubr.f32.gmra.mxu0 %v187
    %v189 = vpop.f32.mrf.mxu0
    %v190 = vadd.f32 0.0, %v189
    %v191 = vpop.f32.mrf.mxu0
    %192 = vmatprep.mubr.f32.mxu0 0.0
    %v193 = vand.u32 %v52, 4294901760
    %v194 = vsub.f32 %v52, %v193
    %v195 = vand.u32 %v194, 4294901760
    %v196 = vsub.f32 %v194, %v195
    %v197 = vand.u32 %v196, 4294901760
    %198 = vmatmul.mubr.f32.gmra.mxu0 %v197
    %v199 = vpop.f32.mrf.mxu0
    %v200 = vadd.f32 0.0, %v199
    %v201 = vpop.f32.mrf.mxu0
    %202 = vmatprep.mubr.f32.mxu0 0.0
    %v203 = vand.u32 %v55, 4294901760
    %v204 = vsub.f32 %v55, %v203
    %v205 = vand.u32 %v204, 4294901760
    %v206 = vsub.f32 %v204, %v205
    %v207 = vand.u32 %v206, 4294901760
    %208 = vmatmul.mubr.f32.gmra.mxu0 %v207
    %v209 = vpop.f32.mrf.mxu0
    %v210 = vadd.f32 0.0, %v209
    %v211 = vpop.f32.mrf.mxu0
    %212 = vmatprep.mubr.f32.mxu0 0.0
    %v213 = vand.u32 %v58, 4294901760
    %v214 = vsub.f32 %v58, %v213
    %v215 = vand.u32 %v214, 4294901760
    %v216 = vsub.f32 %v214, %v215
    %v217 = vand.u32 %v216, 4294901760
    %218 = vmatmul.mubr.f32.gmra.mxu0 %v217
    %v219 = vpop.f32.mrf.mxu0
    %v220 = vadd.f32 0.0, %v219
    %v221 = vpop.f32.mrf.mxu0
    %222 = vmatprep.mubr.f32.mxu0 0.0
    %v223 = vand.u32 %v61, 4294901760
    %v224 = vsub.f32 %v61, %v223
    %v225 = vand.u32 %v224, 4294901760
    %v226 = vsub.f32 %v224, %v225
    %v227 = vand.u32 %v226, 4294901760
    %228 = vmatmul.mubr.f32.gmra.mxu0 %v227
    %v229 = vpop.f32.mrf.mxu0
    %v230 = vadd.f32 0.0, %v229
    %v231 = vpop.f32.mrf.mxu0
    %232 = vmatprep.mubr.f32.mxu0 0.0
    %v233 = vand.u32 %v64, 4294901760
    %v234 = vsub.f32 %v64, %v233
    %v235 = vand.u32 %v234, 4294901760
    %v236 = vsub.f32 %v234, %v235
    %v237 = vand.u32 %v236, 4294901760
    %238 = vmatmul.mubr.f32.gmra.mxu0 %v237
    %v239 = vpop.f32.mrf.mxu0
    %v240 = vadd.f32 0.0, %v239
    %v241 = vpop.f32.mrf.mxu0
    %242 = vmatprep.mubr.f32.mxu0 0.0
    %v243 = vand.u32 %v67, 4294901760
    %v244 = vsub.f32 %v67, %v243
    %v245 = vand.u32 %v244, 4294901760
    %v246 = vsub.f32 %v244, %v245
    %v247 = vand.u32 %v246, 4294901760
    %248 = vmatmul.mubr.f32.gmra.mxu0 %v247
    %v249 = vpop.f32.mrf.mxu0
    %v250 = vadd.f32 0.0, %v249
    %v251 = vpop.f32.mrf.mxu0
    %252 = vmatprep.mubr.f32.mxu0 0.0
    %v253 = vand.u32 %v70, 4294901760
    %v254 = vsub.f32 %v70, %v253
    %v255 = vand.u32 %v254, 4294901760
    %v256 = vsub.f32 %v254, %v255
    %v257 = vand.u32 %v256, 4294901760
    %258 = vmatmul.mubr.f32.gmra.mxu0 %v257
    %v259 = vpop.f32.mrf.mxu0
    %v260 = vadd.f32 0.0, %v259
    %v261 = vpop.f32.mrf.mxu0
    %262 = vmatprep.mubr.f32.mxu0 0.0
    %v263 = vand.u32 %v73, 4294901760
    %v264 = vsub.f32 %v73, %v263
    %v265 = vand.u32 %v264, 4294901760
    %v266 = vsub.f32 %v264, %v265
    %v267 = vand.u32 %v266, 4294901760
    %268 = vmatmul.mubr.f32.gmra.mxu0 %v267
    %v269 = vpop.f32.mrf.mxu0
    %v270 = vadd.f32 0.0, %v269
    %v271 = vpop.f32.mrf.mxu0
    %272 = vmatprep.mubr.f32.mxu0 0.0
    %v273 = vand.u32 %v76, 4294901760
    %v274 = vsub.f32 %v76, %v273
    %v275 = vand.u32 %v274, 4294901760
    %v276 = vsub.f32 %v274, %v275
    %v277 = vand.u32 %v276, 4294901760
    %278 = vmatmul.mubr.f32.gmra.mxu0 %v277
    %v279 = vpop.f32.mrf.mxu0
    %v280 = vadd.f32 0.0, %v279
    %v281 = vpop.f32.mrf.mxu0
    %282 = vmatprep.mubr.f32.mxu0 0.0
    %v283 = vand.u32 %v79, 4294901760
    %v284 = vsub.f32 %v79, %v283
    %v285 = vand.u32 %v284, 4294901760
    %v286 = vsub.f32 %v284, %v285
    %v287 = vand.u32 %v286, 4294901760
    %288 = vmatmul.mubr.f32.gmra.mxu0 %v287
    %v289 = vpop.f32.mrf.mxu0
    %v290 = vadd.f32 0.0, %v289
    %v291 = vpop.f32.mrf.mxu0
    %292 = vmatprep.mubr.f32.mxu0 0.0
    %v293 = vand.u32 %v82, 4294901760
    %v294 = vsub.f32 %v82, %v293
    %v295 = vand.u32 %v294, 4294901760
    %v296 = vsub.f32 %v294, %v295
    %v297 = vand.u32 %v296, 4294901760
    %298 = vmatmul.mubr.f32.gmra.mxu0 %v297
    %v299 = vpop.f32.mrf.mxu0
    %v300 = vadd.f32 0.0, %v299
    %v301 = vpop.f32.mrf.mxu0
    %302 = vmatprep.mubr.f32.mxu0 0.0
    %v303 = vand.u32 %v85, 4294901760
    %v304 = vsub.f32 %v85, %v303
    %v305 = vand.u32 %v304, 4294901760
    %v306 = vsub.f32 %v304, %v305
    %v307 = vand.u32 %v306, 4294901760
    %308 = vmatmul.mubr.f32.gmra.mxu0 %v307
    %v309 = vpop.f32.mrf.mxu0
    %v310 = vadd.f32 0.0, %v309
    %v311 = vpop.f32.mrf.mxu0
    %312 = vdwg.mxu0
    %313 = vmatprep.subr.mxu0 0.0
    %314 = vmatpush1.msra.mxu0 0.0
    %315 = vmatprep.subr.mxu0 0.0
    %316 = vmatpush1.msra.mxu0 0.0
    %317 = vmatprep.subr.mxu0 0.0
    %318 = vmatpush1.msra.mxu0 0.0
    %319 = vmatprep.subr.mxu0 0.0
    %320 = vmatpush1.msra.mxu0 0.0
    %321 = vmatprep.subr.mxu0 0.0
    %322 = vmatpush1.msra.mxu0 0.0
    %323 = vmatprep.subr.mxu0 0.0
    %324 = vmatpush1.msra.mxu0 0.0
    %325 = vmatprep.subr.mxu0 0.0
    %326 = vmatpush1.msra.mxu0 0.0
    %327 = vmatprep.subr.mxu0 0.0
    %328 = vmatpush1.msra.mxu0 0.0
    %329 = vmatprep.subr.mxu0 0.0
    %330 = vmatpush1.msra.mxu0 0.0
    %331 = vmatprep.subr.mxu0 0.0
    %332 = vmatpush1.msra.mxu0 0.0
    %333 = vmatprep.subr.mxu0 0.0
    %334 = vmatpush1.msra.mxu0 0.0
    %335 = vmatprep.subr.mxu0 0.0
    %336 = vmatpush1.msra.mxu0 0.0
    %337 = vmatprep.subr.mxu0 0.0
    %338 = vmatpush1.msra.mxu0 0.0
    %339 = vmatprep.subr.mxu0 0.0
    %340 = vmatpush1.msra.mxu0 0.0
    %341 = vmatprep.subr.mxu0 0.0
    %342 = vmatpush1.msra.mxu0 0.0
    %343 = vmatprep.subr.mxu0 0.0
    %v344 = vand.u32 %v18, 4294901760
    %v345 = vsub.f32 %v18, %v344
    %v346 = vand.u32 %v345, 4294901760
    %v347 = vsub.f32 %v345, %v346
    %v348 = vand.u32 %v347, 4294901760
    %349 = vmatpush1.msra.mxu0 %v348
    %350 = vmatprep.subr.mxu0 0.0
    %351 = vmatpush2.msra.mxu0 0.0
    %352 = vmatprep.subr.mxu0 0.0
    %353 = vmatpush2.msra.mxu0 0.0
    %354 = vmatprep.subr.mxu0 0.0
    %355 = vmatpush2.msra.mxu0 0.0
    %356 = vmatprep.subr.mxu0 0.0
    %357 = vmatpush2.msra.mxu0 0.0
    %358 = vmatprep.subr.mxu0 0.0
    %359 = vmatpush2.msra.mxu0 0.0
    %360 = vmatprep.subr.mxu0 0.0
    %361 = vmatpush2.msra.mxu0 0.0
    %362 = vmatprep.subr.mxu0 0.0
    %363 = vmatpush2.msra.mxu0 0.0
    %364 = vmatprep.subr.mxu0 0.0
    %365 = vmatpush2.msra.mxu0 0.0
    %366 = vmatprep.subr.mxu0 0.0
    %367 = vmatpush2.msra.mxu0 0.0
    %368 = vmatprep.subr.mxu0 0.0
    %369 = vmatpush2.msra.mxu0 0.0
    %370 = vmatprep.subr.mxu0 0.0
    %371 = vmatpush2.msra.mxu0 0.0
    %372 = vmatprep.subr.mxu0 0.0
    %373 = vmatpush2.msra.mxu0 0.0
    %374 = vmatprep.subr.mxu0 0.0
    %375 = vmatpush2.msra.mxu0 0.0
    %376 = vmatprep.subr.mxu0 0.0
    %377 = vmatpush2.msra.mxu0 0.0
    %378 = vmatprep.subr.mxu0 0.0
    %379 = vmatpush2.msra.mxu0 0.0
    %380 = vmatprep.subr.mxu0 0.0
    %381 = vmatpush2.msra.mxu0 0.0
    %382 = vmatprep.mubr.f32.mxu0 0.0
    %v383 = vand.u32 %v40, 4294901760
    %384 = vmatmul.mubr.f32.gmra.mxu0 %v383
    %v385 = vpop.f32.mrf.mxu0
    %v386 = vadd.f32 %v160, %v385
    %v387 = vpop.f32.mrf.mxu0
    %388 = vmatprep.mubr.f32.mxu0 0.0
    %v389 = vand.u32 %v43, 4294901760
    %390 = vmatmul.mubr.f32.gmra.mxu0 %v389
    %v391 = vpop.f32.mrf.mxu0
    %v392 = vadd.f32 %v170, %v391
    %v393 = vpop.f32.mrf.mxu0
    %394 = vmatprep.mubr.f32.mxu0 0.0
    %v395 = vand.u32 %v46, 4294901760
    %396 = vmatmul.mubr.f32.gmra.mxu0 %v395
    %v397 = vpop.f32.mrf.mxu0
    %v398 = vadd.f32 %v180, %v397
    %v399 = vpop.f32.mrf.mxu0
    %400 = vmatprep.mubr.f32.mxu0 0.0
    %v401 = vand.u32 %v49, 4294901760
    %402 = vmatmul.mubr.f32.gmra.mxu0 %v401
    %v403 = vpop.f32.mrf.mxu0
    %v404 = vadd.f32 %v190, %v403
    %v405 = vpop.f32.mrf.mxu0
    %406 = vmatprep.mubr.f32.mxu0 0.0
    %v407 = vand.u32 %v52, 4294901760
    %408 = vmatmul.mubr.f32.gmra.mxu0 %v407
    %v409 = vpop.f32.mrf.mxu0
    %v410 = vadd.f32 %v200, %v409
    %v411 = vpop.f32.mrf.mxu0
    %412 = vmatprep.mubr.f32.mxu0 0.0
    %v413 = vand.u32 %v55, 4294901760
    %414 = vmatmul.mubr.f32.gmra.mxu0 %v413
    %v415 = vpop.f32.mrf.mxu0
    %v416 = vadd.f32 %v210, %v415
    %v417 = vpop.f32.mrf.mxu0
    %418 = vmatprep.mubr.f32.mxu0 0.0
    %v419 = vand.u32 %v58, 4294901760
    %420 = vmatmul.mubr.f32.gmra.mxu0 %v419
    %v421 = vpop.f32.mrf.mxu0
    %v422 = vadd.f32 %v220, %v421
    %v423 = vpop.f32.mrf.mxu0
    %424 = vmatprep.mubr.f32.mxu0 0.0
    %v425 = vand.u32 %v61, 4294901760
    %426 = vmatmul.mubr.f32.gmra.mxu0 %v425
    %v427 = vpop.f32.mrf.mxu0
    %v428 = vadd.f32 %v230, %v427
    %v429 = vpop.f32.mrf.mxu0
    %430 = vmatprep.mubr.f32.mxu0 0.0
    %v431 = vand.u32 %v64, 4294901760
    %432 = vmatmul.mubr.f32.gmra.mxu0 %v431
    %v433 = vpop.f32.mrf.mxu0
    %v434 = vadd.f32 %v240, %v433
    %v435 = vpop.f32.mrf.mxu0
    %436 = vmatprep.mubr.f32.mxu0 0.0
    %v437 = vand.u32 %v67, 4294901760
    %438 = vmatmul.mubr.f32.gmra.mxu0 %v437
    %v439 = vpop.f32.mrf.mxu0
    %v440 = vadd.f32 %v250, %v439
    %v441 = vpop.f32.mrf.mxu0
    %442 = vmatprep.mubr.f32.mxu0 0.0
    %v443 = vand.u32 %v70, 4294901760
    %444 = vmatmul.mubr.f32.gmra.mxu0 %v443
    %v445 = vpop.f32.mrf.mxu0
    %v446 = vadd.f32 %v260, %v445
    %v447 = vpop.f32.mrf.mxu0
    %448 = vmatprep.mubr.f32.mxu0 0.0
    %v449 = vand.u32 %v73, 4294901760
    %450 = vmatmul.mubr.f32.gmra.mxu0 %v449
    %v451 = vpop.f32.mrf.mxu0
    %v452 = vadd.f32 %v270, %v451
    %v453 = vpop.f32.mrf.mxu0
    %454 = vmatprep.mubr.f32.mxu0 0.0
    %v455 = vand.u32 %v76, 4294901760
    %456 = vmatmul.mubr.f32.gmra.mxu0 %v455
    %v457 = vpop.f32.mrf.mxu0
    %v458 = vadd.f32 %v280, %v457
    %v459 = vpop.f32.mrf.mxu0
    %460 = vmatprep.mubr.f32.mxu0 0.0
    %v461 = vand.u32 %v79, 4294901760
    %462 = vmatmul.mubr.f32.gmra.mxu0 %v461
    %v463 = vpop.f32.mrf.mxu0
    %v464 = vadd.f32 %v290, %v463
    %v465 = vpop.f32.mrf.mxu0
    %466 = vmatprep.mubr.f32.mxu0 0.0
    %v467 = vand.u32 %v82, 4294901760
    %468 = vmatmul.mubr.f32.gmra.mxu0 %v467
    %v469 = vpop.f32.mrf.mxu0
    %v470 = vadd.f32 %v300, %v469
    %v471 = vpop.f32.mrf.mxu0
    %472 = vmatprep.mubr.f32.mxu0 0.0
    %v473 = vand.u32 %v85, 4294901760
    %474 = vmatmul.mubr.f32.gmra.mxu0 %v473
    %v475 = vpop.f32.mrf.mxu0
    %v476 = vadd.f32 %v310, %v475
    %v477 = vpop.f32.mrf.mxu0
    %478 = vdwg.mxu0
    %479 = vmatprep.subr.mxu0 0.0
    %480 = vmatpush1.msra.mxu0 0.0
    %481 = vmatprep.subr.mxu0 0.0
    %482 = vmatpush1.msra.mxu0 0.0
    %483 = vmatprep.subr.mxu0 0.0
    %484 = vmatpush1.msra.mxu0 0.0
    %485 = vmatprep.subr.mxu0 0.0
    %486 = vmatpush1.msra.mxu0 0.0
    %487 = vmatprep.subr.mxu0 0.0
    %488 = vmatpush1.msra.mxu0 0.0
    %489 = vmatprep.subr.mxu0 0.0
    %490 = vmatpush1.msra.mxu0 0.0
    %491 = vmatprep.subr.mxu0 0.0
    %492 = vmatpush1.msra.mxu0 0.0
    %493 = vmatprep.subr.mxu0 0.0
    %494 = vmatpush1.msra.mxu0 0.0
    %495 = vmatprep.subr.mxu0 0.0
    %496 = vmatpush1.msra.mxu0 0.0
    %497 = vmatprep.subr.mxu0 0.0
    %498 = vmatpush1.msra.mxu0 0.0
    %499 = vmatprep.subr.mxu0 0.0
    %500 = vmatpush1.msra.mxu0 0.0
    %501 = vmatprep.subr.mxu0 0.0
    %502 = vmatpush1.msra.mxu0 0.0
    %503 = vmatprep.subr.mxu0 0.0
    %504 = vmatpush1.msra.mxu0 0.0
    %505 = vmatprep.subr.mxu0 0.0
    %506 = vmatpush1.msra.mxu0 0.0
    %507 = vmatprep.subr.mxu0 0.0
    %508 = vmatpush1.msra.mxu0 0.0
    %509 = vmatprep.subr.mxu0 0.0
    %v510 = vand.u32 %v18, 4294901760
    %v511 = vsub.f32 %v18, %v510
    %512 = vmatpush1.msra.mxu0 %v511
    %513 = vmatprep.subr.mxu0 0.0
    %514 = vmatpush2.msra.mxu0 0.0
    %515 = vmatprep.subr.mxu0 0.0
    %516 = vmatpush2.msra.mxu0 0.0
    %517 = vmatprep.subr.mxu0 0.0
    %518 = vmatpush2.msra.mxu0 0.0
    %519 = vmatprep.subr.mxu0 0.0
    %520 = vmatpush2.msra.mxu0 0.0
    %521 = vmatprep.subr.mxu0 0.0
    %522 = vmatpush2.msra.mxu0 0.0
    %523 = vmatprep.subr.mxu0 0.0
    %524 = vmatpush2.msra.mxu0 0.0
    %525 = vmatprep.subr.mxu0 0.0
    %526 = vmatpush2.msra.mxu0 0.0
    %527 = vmatprep.subr.mxu0 0.0
    %528 = vmatpush2.msra.mxu0 0.0
    %529 = vmatprep.subr.mxu0 0.0
    %530 = vmatpush2.msra.mxu0 0.0
    %531 = vmatprep.subr.mxu0 0.0
    %532 = vmatpush2.msra.mxu0 0.0
    %533 = vmatprep.subr.mxu0 0.0
    %534 = vmatpush2.msra.mxu0 0.0
    %535 = vmatprep.subr.mxu0 0.0
    %536 = vmatpush2.msra.mxu0 0.0
    %537 = vmatprep.subr.mxu0 0.0
    %538 = vmatpush2.msra.mxu0 0.0
    %539 = vmatprep.subr.mxu0 0.0
    %540 = vmatpush2.msra.mxu0 0.0
    %541 = vmatprep.subr.mxu0 0.0
    %542 = vmatpush2.msra.mxu0 0.0
    %543 = vmatprep.subr.mxu0 0.0
    %544 = vmatpush2.msra.mxu0 0.0
    %545 = vmatprep.mubr.f32.mxu0 0.0
    %v546 = vand.u32 %v40, 4294901760
    %v547 = vsub.f32 %v40, %v546
    %548 = vmatmul.mubr.f32.gmra.mxu0 %v547
    %v549 = vpop.f32.mrf.mxu0
    %v550 = vadd.f32 %v386, %v549
    %v551 = vpop.f32.mrf.mxu0
    %552 = vmatprep.mubr.f32.mxu0 0.0
    %v553 = vand.u32 %v43, 4294901760
    %v554 = vsub.f32 %v43, %v553
    %555 = vmatmul.mubr.f32.gmra.mxu0 %v554
    %v556 = vpop.f32.mrf.mxu0
    %v557 = vadd.f32 %v392, %v556
    %v558 = vpop.f32.mrf.mxu0
    %559 = vmatprep.mubr.f32.mxu0 0.0
    %v560 = vand.u32 %v46, 4294901760
    %v561 = vsub.f32 %v46, %v560
    %562 = vmatmul.mubr.f32.gmra.mxu0 %v561
    %v563 = vpop.f32.mrf.mxu0
    %v564 = vadd.f32 %v398, %v563
    %v565 = vpop.f32.mrf.mxu0
    %566 = vmatprep.mubr.f32.mxu0 0.0
    %v567 = vand.u32 %v49, 4294901760
    %v568 = vsub.f32 %v49, %v567
    %569 = vmatmul.mubr.f32.gmra.mxu0 %v568
    %v570 = vpop.f32.mrf.mxu0
    %v571 = vadd.f32 %v404, %v570
    %v572 = vpop.f32.mrf.mxu0
    %573 = vmatprep.mubr.f32.mxu0 0.0
    %v574 = vand.u32 %v52, 4294901760
    %v575 = vsub.f32 %v52, %v574
    %576 = vmatmul.mubr.f32.gmra.mxu0 %v575
    %v577 = vpop.f32.mrf.mxu0
    %v578 = vadd.f32 %v410, %v577
    %v579 = vpop.f32.mrf.mxu0
    %580 = vmatprep.mubr.f32.mxu0 0.0
    %v581 = vand.u32 %v55, 4294901760
    %v582 = vsub.f32 %v55, %v581
    %583 = vmatmul.mubr.f32.gmra.mxu0 %v582
    %v584 = vpop.f32.mrf.mxu0
    %v585 = vadd.f32 %v416, %v584
    %v586 = vpop.f32.mrf.mxu0
    %587 = vmatprep.mubr.f32.mxu0 0.0
    %v588 = vand.u32 %v58, 4294901760
    %v589 = vsub.f32 %v58, %v588
    %590 = vmatmul.mubr.f32.gmra.mxu0 %v589
    %v591 = vpop.f32.mrf.mxu0
    %v592 = vadd.f32 %v422, %v591
    %v593 = vpop.f32.mrf.mxu0
    %594 = vmatprep.mubr.f32.mxu0 0.0
    %v595 = vand.u32 %v61, 4294901760
    %v596 = vsub.f32 %v61, %v595
    %597 = vmatmul.mubr.f32.gmra.mxu0 %v596
    %v598 = vpop.f32.mrf.mxu0
    %v599 = vadd.f32 %v428, %v598
    %v600 = vpop.f32.mrf.mxu0
    %601 = vmatprep.mubr.f32.mxu0 0.0
    %v602 = vand.u32 %v64, 4294901760
    %v603 = vsub.f32 %v64, %v602
    %604 = vmatmul.mubr.f32.gmra.mxu0 %v603
    %v605 = vpop.f32.mrf.mxu0
    %v606 = vadd.f32 %v434, %v605
    %v607 = vpop.f32.mrf.mxu0
    %608 = vmatprep.mubr.f32.mxu0 0.0
    %v609 = vand.u32 %v67, 4294901760
    %v610 = vsub.f32 %v67, %v609
    %611 = vmatmul.mubr.f32.gmra.mxu0 %v610
    %v612 = vpop.f32.mrf.mxu0
    %v613 = vadd.f32 %v440, %v612
    %v614 = vpop.f32.mrf.mxu0
    %615 = vmatprep.mubr.f32.mxu0 0.0
    %v616 = vand.u32 %v70, 4294901760
    %v617 = vsub.f32 %v70, %v616
    %618 = vmatmul.mubr.f32.gmra.mxu0 %v617
    %v619 = vpop.f32.mrf.mxu0
    %v620 = vadd.f32 %v446, %v619
    %v621 = vpop.f32.mrf.mxu0
    %622 = vmatprep.mubr.f32.mxu0 0.0
    %v623 = vand.u32 %v73, 4294901760
    %v624 = vsub.f32 %v73, %v623
    %625 = vmatmul.mubr.f32.gmra.mxu0 %v624
    %v626 = vpop.f32.mrf.mxu0
    %v627 = vadd.f32 %v452, %v626
    %v628 = vpop.f32.mrf.mxu0
    %629 = vmatprep.mubr.f32.mxu0 0.0
    %v630 = vand.u32 %v76, 4294901760
    %v631 = vsub.f32 %v76, %v630
    %632 = vmatmul.mubr.f32.gmra.mxu0 %v631
    %v633 = vpop.f32.mrf.mxu0
    %v634 = vadd.f32 %v458, %v633
    %v635 = vpop.f32.mrf.mxu0
    %636 = vmatprep.mubr.f32.mxu0 0.0
    %v637 = vand.u32 %v79, 4294901760
    %v638 = vsub.f32 %v79, %v637
    %639 = vmatmul.mubr.f32.gmra.mxu0 %v638
    %v640 = vpop.f32.mrf.mxu0
    %v641 = vadd.f32 %v464, %v640
    %v642 = vpop.f32.mrf.mxu0
    %643 = vmatprep.mubr.f32.mxu0 0.0
    %v644 = vand.u32 %v82, 4294901760
    %v645 = vsub.f32 %v82, %v644
    %646 = vmatmul.mubr.f32.gmra.mxu0 %v645
    %v647 = vpop.f32.mrf.mxu0
    %v648 = vadd.f32 %v470, %v647
    %v649 = vpop.f32.mrf.mxu0
    %650 = vmatprep.mubr.f32.mxu0 0.0
    %v651 = vand.u32 %v85, 4294901760
    %v652 = vsub.f32 %v85, %v651
    %653 = vmatmul.mubr.f32.gmra.mxu0 %v652
    %v654 = vpop.f32.mrf.mxu0
    %v655 = vadd.f32 %v476, %v654
    %v656 = vpop.f32.mrf.mxu0
    %657 = vdwg.mxu0
    %658 = vmatprep.subr.mxu0 0.0
    %659 = vmatpush1.msra.mxu0 0.0
    %660 = vmatprep.subr.mxu0 0.0
    %661 = vmatpush1.msra.mxu0 0.0
    %662 = vmatprep.subr.mxu0 0.0
    %663 = vmatpush1.msra.mxu0 0.0
    %664 = vmatprep.subr.mxu0 0.0
    %665 = vmatpush1.msra.mxu0 0.0
    %666 = vmatprep.subr.mxu0 0.0
    %667 = vmatpush1.msra.mxu0 0.0
    %668 = vmatprep.subr.mxu0 0.0
    %669 = vmatpush1.msra.mxu0 0.0
    %670 = vmatprep.subr.mxu0 0.0
    %671 = vmatpush1.msra.mxu0 0.0
    %672 = vmatprep.subr.mxu0 0.0
    %673 = vmatpush1.msra.mxu0 0.0
    %674 = vmatprep.subr.mxu0 0.0
    %675 = vmatpush1.msra.mxu0 0.0
    %676 = vmatprep.subr.mxu0 0.0
    %677 = vmatpush1.msra.mxu0 0.0
    %678 = vmatprep.subr.mxu0 0.0
    %679 = vmatpush1.msra.mxu0 0.0
    %680 = vmatprep.subr.mxu0 0.0
    %681 = vmatpush1.msra.mxu0 0.0
    %682 = vmatprep.subr.mxu0 0.0
    %683 = vmatpush1.msra.mxu0 0.0
    %684 = vmatprep.subr.mxu0 0.0
    %685 = vmatpush1.msra.mxu0 0.0
    %686 = vmatprep.subr.mxu0 0.0
    %687 = vmatpush1.msra.mxu0 0.0
    %688 = vmatprep.subr.mxu0 0.0
    %v689 = vand.u32 %v18, 4294901760
    %690 = vmatpush1.msra.mxu0 %v689
    %691 = vmatprep.subr.mxu0 0.0
    %692 = vmatpush2.msra.mxu0 0.0
    %693 = vmatprep.subr.mxu0 0.0
    %694 = vmatpush2.msra.mxu0 0.0
    %695 = vmatprep.subr.mxu0 0.0
    %696 = vmatpush2.msra.mxu0 0.0
    %697 = vmatprep.subr.mxu0 0.0
    %698 = vmatpush2.msra.mxu0 0.0
    %699 = vmatprep.subr.mxu0 0.0
    %700 = vmatpush2.msra.mxu0 0.0
    %701 = vmatprep.subr.mxu0 0.0
    %702 = vmatpush2.msra.mxu0 0.0
    %703 = vmatprep.subr.mxu0 0.0
    %704 = vmatpush2.msra.mxu0 0.0
    %705 = vmatprep.subr.mxu0 0.0
    %706 = vmatpush2.msra.mxu0 0.0
    %707 = vmatprep.subr.mxu0 0.0
    %708 = vmatpush2.msra.mxu0 0.0
    %709 = vmatprep.subr.mxu0 0.0
    %710 = vmatpush2.msra.mxu0 0.0
    %711 = vmatprep.subr.mxu0 0.0
    %712 = vmatpush2.msra.mxu0 0.0
    %713 = vmatprep.subr.mxu0 0.0
    %714 = vmatpush2.msra.mxu0 0.0
    %715 = vmatprep.subr.mxu0 0.0
    %716 = vmatpush2.msra.mxu0 0.0
    %717 = vmatprep.subr.mxu0 0.0
    %718 = vmatpush2.msra.mxu0 0.0
    %719 = vmatprep.subr.mxu0 0.0
    %720 = vmatpush2.msra.mxu0 0.0
    %721 = vmatprep.subr.mxu0 0.0
    %722 = vmatpush2.msra.mxu0 0.0
    %723 = vmatprep.mubr.f32.mxu0 0.0
    %v724 = vand.u32 %v40, 4294901760
    %v725 = vsub.f32 %v40, %v724
    %v726 = vand.u32 %v725, 4294901760
    %727 = vmatmul.mubr.f32.gmra.mxu0 %v726
    %v728 = vpop.f32.mrf.mxu0
    %v729 = vadd.f32 %v550, %v728
    %v730 = vpop.f32.mrf.mxu0
    %731 = vmatprep.mubr.f32.mxu0 0.0
    %v732 = vand.u32 %v43, 4294901760
    %v733 = vsub.f32 %v43, %v732
    %v734 = vand.u32 %v733, 4294901760
    %735 = vmatmul.mubr.f32.gmra.mxu0 %v734
    %v736 = vpop.f32.mrf.mxu0
    %v737 = vadd.f32 %v557, %v736
    %v738 = vpop.f32.mrf.mxu0
    %739 = vmatprep.mubr.f32.mxu0 0.0
    %v740 = vand.u32 %v46, 4294901760
    %v741 = vsub.f32 %v46, %v740
    %v742 = vand.u32 %v741, 4294901760
    %743 = vmatmul.mubr.f32.gmra.mxu0 %v742
    %v744 = vpop.f32.mrf.mxu0
    %v745 = vadd.f32 %v564, %v744
    %v746 = vpop.f32.mrf.mxu0
    %747 = vmatprep.mubr.f32.mxu0 0.0
    %v748 = vand.u32 %v49, 4294901760
    %v749 = vsub.f32 %v49, %v748
    %v750 = vand.u32 %v749, 4294901760
    %751 = vmatmul.mubr.f32.gmra.mxu0 %v750
    %v752 = vpop.f32.mrf.mxu0
    %v753 = vadd.f32 %v571, %v752
    %v754 = vpop.f32.mrf.mxu0
    %755 = vmatprep.mubr.f32.mxu0 0.0
    %v756 = vand.u32 %v52, 4294901760
    %v757 = vsub.f32 %v52, %v756
    %v758 = vand.u32 %v757, 4294901760
    %759 = vmatmul.mubr.f32.gmra.mxu0 %v758
    %v760 = vpop.f32.mrf.mxu0
    %v761 = vadd.f32 %v578, %v760
    %v762 = vpop.f32.mrf.mxu0
    %763 = vmatprep.mubr.f32.mxu0 0.0
    %v764 = vand.u32 %v55, 4294901760
    %v765 = vsub.f32 %v55, %v764
    %v766 = vand.u32 %v765, 4294901760
    %767 = vmatmul.mubr.f32.gmra.mxu0 %v766
    %v768 = vpop.f32.mrf.mxu0
    %v769 = vadd.f32 %v585, %v768
    %v770 = vpop.f32.mrf.mxu0
    %771 = vmatprep.mubr.f32.mxu0 0.0
    %v772 = vand.u32 %v58, 4294901760
    %v773 = vsub.f32 %v58, %v772
    %v774 = vand.u32 %v773, 4294901760
    %775 = vmatmul.mubr.f32.gmra.mxu0 %v774
    %v776 = vpop.f32.mrf.mxu0
    %v777 = vadd.f32 %v592, %v776
    %v778 = vpop.f32.mrf.mxu0
    %779 = vmatprep.mubr.f32.mxu0 0.0
    %v780 = vand.u32 %v61, 4294901760
    %v781 = vsub.f32 %v61, %v780
    %v782 = vand.u32 %v781, 4294901760
    %783 = vmatmul.mubr.f32.gmra.mxu0 %v782
    %v784 = vpop.f32.mrf.mxu0
    %v785 = vadd.f32 %v599, %v784
    %v786 = vpop.f32.mrf.mxu0
    %787 = vmatprep.mubr.f32.mxu0 0.0
    %v788 = vand.u32 %v64, 4294901760
    %v789 = vsub.f32 %v64, %v788
    %v790 = vand.u32 %v789, 4294901760
    %791 = vmatmul.mubr.f32.gmra.mxu0 %v790
    %v792 = vpop.f32.mrf.mxu0
    %v793 = vadd.f32 %v606, %v792
    %v794 = vpop.f32.mrf.mxu0
    %795 = vmatprep.mubr.f32.mxu0 0.0
    %v796 = vand.u32 %v67, 4294901760
    %v797 = vsub.f32 %v67, %v796
    %v798 = vand.u32 %v797, 4294901760
    %799 = vmatmul.mubr.f32.gmra.mxu0 %v798
    %v800 = vpop.f32.mrf.mxu0
    %v801 = vadd.f32 %v613, %v800
    %v802 = vpop.f32.mrf.mxu0
    %803 = vmatprep.mubr.f32.mxu0 0.0
    %v804 = vand.u32 %v70, 4294901760
    %v805 = vsub.f32 %v70, %v804
    %v806 = vand.u32 %v805, 4294901760
    %807 = vmatmul.mubr.f32.gmra.mxu0 %v806
    %v808 = vpop.f32.mrf.mxu0
    %v809 = vadd.f32 %v620, %v808
    %v810 = vpop.f32.mrf.mxu0
    %811 = vmatprep.mubr.f32.mxu0 0.0
    %v812 = vand.u32 %v73, 4294901760
    %v813 = vsub.f32 %v73, %v812
    %v814 = vand.u32 %v813, 4294901760
    %815 = vmatmul.mubr.f32.gmra.mxu0 %v814
    %v816 = vpop.f32.mrf.mxu0
    %v817 = vadd.f32 %v627, %v816
    %v818 = vpop.f32.mrf.mxu0
    %819 = vmatprep.mubr.f32.mxu0 0.0
    %v820 = vand.u32 %v76, 4294901760
    %v821 = vsub.f32 %v76, %v820
    %v822 = vand.u32 %v821, 4294901760
    %823 = vmatmul.mubr.f32.gmra.mxu0 %v822
    %v824 = vpop.f32.mrf.mxu0
    %v825 = vadd.f32 %v634, %v824
    %v826 = vpop.f32.mrf.mxu0
    %827 = vmatprep.mubr.f32.mxu0 0.0
    %v828 = vand.u32 %v79, 4294901760
    %v829 = vsub.f32 %v79, %v828
    %v830 = vand.u32 %v829, 4294901760
    %831 = vmatmul.mubr.f32.gmra.mxu0 %v830
    %v832 = vpop.f32.mrf.mxu0
    %v833 = vadd.f32 %v641, %v832
    %v834 = vpop.f32.mrf.mxu0
    %835 = vmatprep.mubr.f32.mxu0 0.0
    %v836 = vand.u32 %v82, 4294901760
    %v837 = vsub.f32 %v82, %v836
    %v838 = vand.u32 %v837, 4294901760
    %839 = vmatmul.mubr.f32.gmra.mxu0 %v838
    %v840 = vpop.f32.mrf.mxu0
    %v841 = vadd.f32 %v648, %v840
    %v842 = vpop.f32.mrf.mxu0
    %843 = vmatprep.mubr.f32.mxu0 0.0
    %v844 = vand.u32 %v85, 4294901760
    %v845 = vsub.f32 %v85, %v844
    %v846 = vand.u32 %v845, 4294901760
    %847 = vmatmul.mubr.f32.gmra.mxu0 %v846
    %v848 = vpop.f32.mrf.mxu0
    %v849 = vadd.f32 %v655, %v848
    %v850 = vpop.f32.mrf.mxu0
    %851 = vdwg.mxu0
    %852 = vmatprep.subr.mxu0 0.0
    %853 = vmatpush1.msra.mxu0 0.0
    %854 = vmatprep.subr.mxu0 0.0
    %855 = vmatpush1.msra.mxu0 0.0
    %856 = vmatprep.subr.mxu0 0.0
    %857 = vmatpush1.msra.mxu0 0.0
    %858 = vmatprep.subr.mxu0 0.0
    %859 = vmatpush1.msra.mxu0 0.0
    %860 = vmatprep.subr.mxu0 0.0
    %861 = vmatpush1.msra.mxu0 0.0
    %862 = vmatprep.subr.mxu0 0.0
    %863 = vmatpush1.msra.mxu0 0.0
    %864 = vmatprep.subr.mxu0 0.0
    %865 = vmatpush1.msra.mxu0 0.0
    %866 = vmatprep.subr.mxu0 0.0
    %867 = vmatpush1.msra.mxu0 0.0
    %868 = vmatprep.subr.mxu0 0.0
    %869 = vmatpush1.msra.mxu0 0.0
    %870 = vmatprep.subr.mxu0 0.0
    %871 = vmatpush1.msra.mxu0 0.0
    %872 = vmatprep.subr.mxu0 0.0
    %873 = vmatpush1.msra.mxu0 0.0
    %874 = vmatprep.subr.mxu0 0.0
    %875 = vmatpush1.msra.mxu0 0.0
    %876 = vmatprep.subr.mxu0 0.0
    %877 = vmatpush1.msra.mxu0 0.0
    %878 = vmatprep.subr.mxu0 0.0
    %879 = vmatpush1.msra.mxu0 0.0
    %880 = vmatprep.subr.mxu0 0.0
    %881 = vmatpush1.msra.mxu0 0.0
    %882 = vmatprep.subr.mxu0 0.0
    %v883 = vand.u32 %v18, 4294901760
    %v884 = vsub.f32 %v18, %v883
    %v885 = vand.u32 %v884, 4294901760
    %886 = vmatpush1.msra.mxu0 %v885
    %887 = vmatprep.subr.mxu0 0.0
    %888 = vmatpush2.msra.mxu0 0.0
    %889 = vmatprep.subr.mxu0 0.0
    %890 = vmatpush2.msra.mxu0 0.0
    %891 = vmatprep.subr.mxu0 0.0
    %892 = vmatpush2.msra.mxu0 0.0
    %893 = vmatprep.subr.mxu0 0.0
    %894 = vmatpush2.msra.mxu0 0.0
    %895 = vmatprep.subr.mxu0 0.0
    %896 = vmatpush2.msra.mxu0 0.0
    %897 = vmatprep.subr.mxu0 0.0
    %898 = vmatpush2.msra.mxu0 0.0
    %899 = vmatprep.subr.mxu0 0.0
    %900 = vmatpush2.msra.mxu0 0.0
    %901 = vmatprep.subr.mxu0 0.0
    %902 = vmatpush2.msra.mxu0 0.0
    %903 = vmatprep.subr.mxu0 0.0
    %904 = vmatpush2.msra.mxu0 0.0
    %905 = vmatprep.subr.mxu0 0.0
    %906 = vmatpush2.msra.mxu0 0.0
    %907 = vmatprep.subr.mxu0 0.0
    %908 = vmatpush2.msra.mxu0 0.0
    %909 = vmatprep.subr.mxu0 0.0
    %910 = vmatpush2.msra.mxu0 0.0
    %911 = vmatprep.subr.mxu0 0.0
    %912 = vmatpush2.msra.mxu0 0.0
    %913 = vmatprep.subr.mxu0 0.0
    %914 = vmatpush2.msra.mxu0 0.0
    %915 = vmatprep.subr.mxu0 0.0
    %916 = vmatpush2.msra.mxu0 0.0
    %917 = vmatprep.subr.mxu0 0.0
    %918 = vmatpush2.msra.mxu0 0.0
    %919 = vmatprep.mubr.f32.mxu0 0.0
    %v920 = vand.u32 %v40, 4294901760
    %921 = vmatmul.mubr.f32.gmra.mxu0 %v920
    %v922 = vpop.f32.mrf.mxu0
    %v923 = vadd.f32 %v729, %v922
    %v924 = vpop.f32.mrf.mxu0
    %925 = vmatprep.mubr.f32.mxu0 0.0
    %v926 = vand.u32 %v43, 4294901760
    %927 = vmatmul.mubr.f32.gmra.mxu0 %v926
    %v928 = vpop.f32.mrf.mxu0
    %v929 = vadd.f32 %v737, %v928
    %v930 = vpop.f32.mrf.mxu0
    %931 = vmatprep.mubr.f32.mxu0 0.0
    %v932 = vand.u32 %v46, 4294901760
    %933 = vmatmul.mubr.f32.gmra.mxu0 %v932
    %v934 = vpop.f32.mrf.mxu0
    %v935 = vadd.f32 %v745, %v934
    %v936 = vpop.f32.mrf.mxu0
    %937 = vmatprep.mubr.f32.mxu0 0.0
    %v938 = vand.u32 %v49, 4294901760
    %939 = vmatmul.mubr.f32.gmra.mxu0 %v938
    %v940 = vpop.f32.mrf.mxu0
    %v941 = vadd.f32 %v753, %v940
    %v942 = vpop.f32.mrf.mxu0
    %943 = vmatprep.mubr.f32.mxu0 0.0
    %v944 = vand.u32 %v52, 4294901760
    %945 = vmatmul.mubr.f32.gmra.mxu0 %v944
    %v946 = vpop.f32.mrf.mxu0
    %v947 = vadd.f32 %v761, %v946
    %v948 = vpop.f32.mrf.mxu0
    %949 = vmatprep.mubr.f32.mxu0 0.0
    %v950 = vand.u32 %v55, 4294901760
    %951 = vmatmul.mubr.f32.gmra.mxu0 %v950
    %v952 = vpop.f32.mrf.mxu0
    %v953 = vadd.f32 %v769, %v952
    %v954 = vpop.f32.mrf.mxu0
    %955 = vmatprep.mubr.f32.mxu0 0.0
    %v956 = vand.u32 %v58, 4294901760
    %957 = vmatmul.mubr.f32.gmra.mxu0 %v956
    %v958 = vpop.f32.mrf.mxu0
    %v959 = vadd.f32 %v777, %v958
    %v960 = vpop.f32.mrf.mxu0
    %961 = vmatprep.mubr.f32.mxu0 0.0
    %v962 = vand.u32 %v61, 4294901760
    %963 = vmatmul.mubr.f32.gmra.mxu0 %v962
    %v964 = vpop.f32.mrf.mxu0
    %v965 = vadd.f32 %v785, %v964
    %v966 = vpop.f32.mrf.mxu0
    %967 = vmatprep.mubr.f32.mxu0 0.0
    %v968 = vand.u32 %v64, 4294901760
    %969 = vmatmul.mubr.f32.gmra.mxu0 %v968
    %v970 = vpop.f32.mrf.mxu0
    %v971 = vadd.f32 %v793, %v970
    %v972 = vpop.f32.mrf.mxu0
    %973 = vmatprep.mubr.f32.mxu0 0.0
    %v974 = vand.u32 %v67, 4294901760
    %975 = vmatmul.mubr.f32.gmra.mxu0 %v974
    %v976 = vpop.f32.mrf.mxu0
    %v977 = vadd.f32 %v801, %v976
    %v978 = vpop.f32.mrf.mxu0
    %979 = vmatprep.mubr.f32.mxu0 0.0
    %v980 = vand.u32 %v70, 4294901760
    %981 = vmatmul.mubr.f32.gmra.mxu0 %v980
    %v982 = vpop.f32.mrf.mxu0
    %v983 = vadd.f32 %v809, %v982
    %v984 = vpop.f32.mrf.mxu0
    %985 = vmatprep.mubr.f32.mxu0 0.0
    %v986 = vand.u32 %v73, 4294901760
    %987 = vmatmul.mubr.f32.gmra.mxu0 %v986
    %v988 = vpop.f32.mrf.mxu0
    %v989 = vadd.f32 %v817, %v988
    %v990 = vpop.f32.mrf.mxu0
    %991 = vmatprep.mubr.f32.mxu0 0.0
    %v992 = vand.u32 %v76, 4294901760
    %993 = vmatmul.mubr.f32.gmra.mxu0 %v992
    %v994 = vpop.f32.mrf.mxu0
    %v995 = vadd.f32 %v825, %v994
    %v996 = vpop.f32.mrf.mxu0
    %997 = vmatprep.mubr.f32.mxu0 0.0
    %v998 = vand.u32 %v79, 4294901760
    %999 = vmatmul.mubr.f32.gmra.mxu0 %v998
    %v1000 = vpop.f32.mrf.mxu0
    %v1001 = vadd.f32 %v833, %v1000
    %v1002 = vpop.f32.mrf.mxu0
    %1003 = vmatprep.mubr.f32.mxu0 0.0
    %v1004 = vand.u32 %v82, 4294901760
    %1005 = vmatmul.mubr.f32.gmra.mxu0 %v1004
    %v1006 = vpop.f32.mrf.mxu0
    %v1007 = vadd.f32 %v841, %v1006
    %v1008 = vpop.f32.mrf.mxu0
    %1009 = vmatprep.mubr.f32.mxu0 0.0
    %v1010 = vand.u32 %v85, 4294901760
    %1011 = vmatmul.mubr.f32.gmra.mxu0 %v1010
    %v1012 = vpop.f32.mrf.mxu0
    %v1013 = vadd.f32 %v849, %v1012
    %v1014 = vpop.f32.mrf.mxu0
    %1015 = vdwg.mxu0
    %1016 = vmatprep.subr.mxu0 0.0
    %1017 = vmatpush1.msra.mxu0 0.0
    %1018 = vmatprep.subr.mxu0 0.0
    %1019 = vmatpush1.msra.mxu0 0.0
    %1020 = vmatprep.subr.mxu0 0.0
    %1021 = vmatpush1.msra.mxu0 0.0
    %1022 = vmatprep.subr.mxu0 0.0
    %1023 = vmatpush1.msra.mxu0 0.0
    %1024 = vmatprep.subr.mxu0 0.0
    %1025 = vmatpush1.msra.mxu0 0.0
    %1026 = vmatprep.subr.mxu0 0.0
    %1027 = vmatpush1.msra.mxu0 0.0
    %1028 = vmatprep.subr.mxu0 0.0
    %1029 = vmatpush1.msra.mxu0 0.0
    %1030 = vmatprep.subr.mxu0 0.0
    %1031 = vmatpush1.msra.mxu0 0.0
    %1032 = vmatprep.subr.mxu0 0.0
    %1033 = vmatpush1.msra.mxu0 0.0
    %1034 = vmatprep.subr.mxu0 0.0
    %1035 = vmatpush1.msra.mxu0 0.0
    %1036 = vmatprep.subr.mxu0 0.0
    %1037 = vmatpush1.msra.mxu0 0.0
    %1038 = vmatprep.subr.mxu0 0.0
    %1039 = vmatpush1.msra.mxu0 0.0
    %1040 = vmatprep.subr.mxu0 0.0
    %1041 = vmatpush1.msra.mxu0 0.0
    %1042 = vmatprep.subr.mxu0 0.0
    %1043 = vmatpush1.msra.mxu0 0.0
    %1044 = vmatprep.subr.mxu0 0.0
    %1045 = vmatpush1.msra.mxu0 0.0
    %1046 = vmatprep.subr.mxu0 0.0
    %v1047 = vand.u32 %v18, 4294901760
    %1048 = vmatpush1.msra.mxu0 %v1047
    %1049 = vmatprep.subr.mxu0 0.0
    %1050 = vmatpush2.msra.mxu0 0.0
    %1051 = vmatprep.subr.mxu0 0.0
    %1052 = vmatpush2.msra.mxu0 0.0
    %1053 = vmatprep.subr.mxu0 0.0
    %1054 = vmatpush2.msra.mxu0 0.0
    %1055 = vmatprep.subr.mxu0 0.0
    %1056 = vmatpush2.msra.mxu0 0.0
    %1057 = vmatprep.subr.mxu0 0.0
    %1058 = vmatpush2.msra.mxu0 0.0
    %1059 = vmatprep.subr.mxu0 0.0
    %1060 = vmatpush2.msra.mxu0 0.0
    %1061 = vmatprep.subr.mxu0 0.0
    %1062 = vmatpush2.msra.mxu0 0.0
    %1063 = vmatprep.subr.mxu0 0.0
    %1064 = vmatpush2.msra.mxu0 0.0
    %1065 = vmatprep.subr.mxu0 0.0
    %1066 = vmatpush2.msra.mxu0 0.0
    %1067 = vmatprep.subr.mxu0 0.0
    %1068 = vmatpush2.msra.mxu0 0.0
    %1069 = vmatprep.subr.mxu0 0.0
    %1070 = vmatpush2.msra.mxu0 0.0
    %1071 = vmatprep.subr.mxu0 0.0
    %1072 = vmatpush2.msra.mxu0 0.0
    %1073 = vmatprep.subr.mxu0 0.0
    %1074 = vmatpush2.msra.mxu0 0.0
    %1075 = vmatprep.subr.mxu0 0.0
    %1076 = vmatpush2.msra.mxu0 0.0
    %1077 = vmatprep.subr.mxu0 0.0
    %1078 = vmatpush2.msra.mxu0 0.0
    %1079 = vmatprep.subr.mxu0 0.0
    %1080 = vmatpush2.msra.mxu0 0.0
    %1081 = vmatprep.mubr.f32.mxu0 0.0
    %v1082 = vand.u32 %v40, 4294901760
    %1083 = vmatmul.mubr.f32.gmra.mxu0 %v1082
    %v1084 = vpop.f32.mrf.mxu0
    %v1085 = vadd.f32 %v923, %v1084
    %v1086 = vpop.f32.mrf.mxu0
    %1087 = vmatprep.mubr.f32.mxu0 0.0
    %v1088 = vand.u32 %v43, 4294901760
    %1089 = vmatmul.mubr.f32.gmra.mxu0 %v1088
    %v1090 = vpop.f32.mrf.mxu0
    %v1091 = vadd.f32 %v929, %v1090
    %v1092 = vpop.f32.mrf.mxu0
    %1093 = vmatprep.mubr.f32.mxu0 0.0
    %v1094 = vand.u32 %v46, 4294901760
    %1095 = vmatmul.mubr.f32.gmra.mxu0 %v1094
    %v1096 = vpop.f32.mrf.mxu0
    %v1097 = vadd.f32 %v935, %v1096
    %v1098 = vpop.f32.mrf.mxu0
    %1099 = vmatprep.mubr.f32.mxu0 0.0
    %v1100 = vand.u32 %v49, 4294901760
    %1101 = vmatmul.mubr.f32.gmra.mxu0 %v1100
    %v1102 = vpop.f32.mrf.mxu0
    %v1103 = vadd.f32 %v941, %v1102
    %v1104 = vpop.f32.mrf.mxu0
    %1105 = vmatprep.mubr.f32.mxu0 0.0
    %v1106 = vand.u32 %v52, 4294901760
    %1107 = vmatmul.mubr.f32.gmra.mxu0 %v1106
    %v1108 = vpop.f32.mrf.mxu0
    %v1109 = vadd.f32 %v947, %v1108
    %v1110 = vpop.f32.mrf.mxu0
    %1111 = vmatprep.mubr.f32.mxu0 0.0
    %v1112 = vand.u32 %v55, 4294901760
    %1113 = vmatmul.mubr.f32.gmra.mxu0 %v1112
    %v1114 = vpop.f32.mrf.mxu0
    %v1115 = vadd.f32 %v953, %v1114
    %v1116 = vpop.f32.mrf.mxu0
    %1117 = vmatprep.mubr.f32.mxu0 0.0
    %v1118 = vand.u32 %v58, 4294901760
    %1119 = vmatmul.mubr.f32.gmra.mxu0 %v1118
    %v1120 = vpop.f32.mrf.mxu0
    %v1121 = vadd.f32 %v959, %v1120
    %v1122 = vpop.f32.mrf.mxu0
    %1123 = vmatprep.mubr.f32.mxu0 0.0
    %v1124 = vand.u32 %v61, 4294901760
    %1125 = vmatmul.mubr.f32.gmra.mxu0 %v1124
    %v1126 = vpop.f32.mrf.mxu0
    %v1127 = vadd.f32 %v965, %v1126
    %v1128 = vpop.f32.mrf.mxu0
    %1129 = vmatprep.mubr.f32.mxu0 0.0
    %v1130 = vand.u32 %v64, 4294901760
    %1131 = vmatmul.mubr.f32.gmra.mxu0 %v1130
    %v1132 = vpop.f32.mrf.mxu0
    %v1133 = vadd.f32 %v971, %v1132
    %v1134 = vpop.f32.mrf.mxu0
    %1135 = vmatprep.mubr.f32.mxu0 0.0
    %v1136 = vand.u32 %v67, 4294901760
    %1137 = vmatmul.mubr.f32.gmra.mxu0 %v1136
    %v1138 = vpop.f32.mrf.mxu0
    %v1139 = vadd.f32 %v977, %v1138
    %v1140 = vpop.f32.mrf.mxu0
    %1141 = vmatprep.mubr.f32.mxu0 0.0
    %v1142 = vand.u32 %v70, 4294901760
    %1143 = vmatmul.mubr.f32.gmra.mxu0 %v1142
    %v1144 = vpop.f32.mrf.mxu0
    %v1145 = vadd.f32 %v983, %v1144
    %v1146 = vpop.f32.mrf.mxu0
    %1147 = vmatprep.mubr.f32.mxu0 0.0
    %v1148 = vand.u32 %v73, 4294901760
    %1149 = vmatmul.mubr.f32.gmra.mxu0 %v1148
    %v1150 = vpop.f32.mrf.mxu0
    %v1151 = vadd.f32 %v989, %v1150
    %v1152 = vpop.f32.mrf.mxu0
    %1153 = vmatprep.mubr.f32.mxu0 0.0
    %v1154 = vand.u32 %v76, 4294901760
    %1155 = vmatmul.mubr.f32.gmra.mxu0 %v1154
    %v1156 = vpop.f32.mrf.mxu0
    %v1157 = vadd.f32 %v995, %v1156
    %v1158 = vpop.f32.mrf.mxu0
    %1159 = vmatprep.mubr.f32.mxu0 0.0
    %v1160 = vand.u32 %v79, 4294901760
    %1161 = vmatmul.mubr.f32.gmra.mxu0 %v1160
    %v1162 = vpop.f32.mrf.mxu0
    %v1163 = vadd.f32 %v1001, %v1162
    %v1164 = vpop.f32.mrf.mxu0
    %1165 = vmatprep.mubr.f32.mxu0 0.0
    %v1166 = vand.u32 %v82, 4294901760
    %1167 = vmatmul.mubr.f32.gmra.mxu0 %v1166
    %v1168 = vpop.f32.mrf.mxu0
    %v1169 = vadd.f32 %v1007, %v1168
    %v1170 = vpop.f32.mrf.mxu0
    %1171 = vmatprep.mubr.f32.mxu0 0.0
    %v1172 = vand.u32 %v85, 4294901760
    %1173 = vmatmul.mubr.f32.gmra.mxu0 %v1172
    %v1174 = vpop.f32.mrf.mxu0
    %v1175 = vadd.f32 %v1013, %v1174
    %v1176 = vpop.f32.mrf.mxu0
    %1177 = vdwg.mxu0
    %v1178 = vxor.u32 %v1085, 2147483648
    %v1179 = vxor.u32 %v1091, 2147483648
    %v1180 = vxor.u32 %v1097, 2147483648
    %v1181 = vxor.u32 %v1103, 2147483648
    %v1182 = vxor.u32 %v1109, 2147483648
    %v1183 = vxor.u32 %v1115, 2147483648
    %v1184 = vxor.u32 %v1121, 2147483648
    %v1185 = vxor.u32 %v1127, 2147483648
    %v1186 = vxor.u32 %v1133, 2147483648
    %v1187 = vxor.u32 %v1139, 2147483648
    %v1188 = vxor.u32 %v1145, 2147483648
    %v1189 = vxor.u32 %v1151, 2147483648
    %v1190 = vxor.u32 %v1157, 2147483648
    %v1191 = vxor.u32 %v1163, 2147483648
    %v1192 = vxor.u32 %v1169, 2147483648
    %v1193 = vxor.u32 %v1175, 2147483648
    %v1194 = vmul.f32 %v1178, 1.442695
    %v1195 = vpow.pop %v1194
    %v1196 = vmul.f32 %v1179, 1.442695
    %v1197 = vpow.pop %v1196
    %v1198 = vmul.f32 %v1180, 1.442695
    %v1199 = vpow.pop %v1198
    %v1200 = vmul.f32 %v1181, 1.442695
    %v1201 = vpow.pop %v1200
    %v1202 = vmul.f32 %v1182, 1.442695
    %v1203 = vpow.pop %v1202
    %v1204 = vmul.f32 %v1183, 1.442695
    %v1205 = vpow.pop %v1204
    %v1206 = vmul.f32 %v1184, 1.442695
    %v1207 = vpow.pop %v1206
    %v1208 = vmul.f32 %v1185, 1.442695
    %v1209 = vpow.pop %v1208
    %v1210 = vmul.f32 %v1186, 1.442695
    %v1211 = vpow.pop %v1210
    %v1212 = vmul.f32 %v1187, 1.442695
    %v1213 = vpow.pop %v1212
    %v1214 = vmul.f32 %v1188, 1.442695
    %v1215 = vpow.pop %v1214
    %v1216 = vmul.f32 %v1189, 1.442695
    %v1217 = vpow.pop %v1216
    %v1218 = vmul.f32 %v1190, 1.442695
    %v1219 = vpow.pop %v1218
    %v1220 = vmul.f32 %v1191, 1.442695
    %v1221 = vpow.pop %v1220
    %v1222 = vmul.f32 %v1192, 1.442695
    %v1223 = vpow.pop %v1222
    %v1224 = vmul.f32 %v1193, 1.442695
    %v1225 = vpow.pop %v1224
    %v1226 = vadd.f32 %v1195, 1.0
    %v1227 = vadd.f32 %v1197, 1.0
    %v1228 = vadd.f32 %v1199, 1.0
    %v1229 = vadd.f32 %v1201, 1.0
    %v1230 = vadd.f32 %v1203, 1.0
    %v1231 = vadd.f32 %v1205, 1.0
    %v1232 = vadd.f32 %v1207, 1.0
    %v1233 = vadd.f32 %v1209, 1.0
    %v1234 = vadd.f32 %v1211, 1.0
    %v1235 = vadd.f32 %v1213, 1.0
    %v1236 = vadd.f32 %v1215, 1.0
    %v1237 = vadd.f32 %v1217, 1.0
    %v1238 = vadd.f32 %v1219, 1.0
    %v1239 = vadd.f32 %v1221, 1.0
    %v1240 = vadd.f32 %v1223, 1.0
    %v1241 = vadd.f32 %v1225, 1.0
    %v1242 = vrcp.pop %v1226
    %v1243 = vmul.f32 1.0, %v1242
    %v1244 = vrcp.pop %v1227
    %v1245 = vmul.f32 1.0, %v1244
    %v1246 = vrcp.pop %v1228
    %v1247 = vmul.f32 1.0, %v1246
    %v1248 = vrcp.pop %v1229
    %v1249 = vmul.f32 1.0, %v1248
    %v1250 = vrcp.pop %v1230
    %v1251 = vmul.f32 1.0, %v1250
    %v1252 = vrcp.pop %v1231
    %v1253 = vmul.f32 1.0, %v1252
    %v1254 = vrcp.pop %v1232
    %v1255 = vmul.f32 1.0, %v1254
    %v1256 = vrcp.pop %v1233
    %v1257 = vmul.f32 1.0, %v1256
    %v1258 = vrcp.pop %v1234
    %v1259 = vmul.f32 1.0, %v1258
    %v1260 = vrcp.pop %v1235
    %v1261 = vmul.f32 1.0, %v1260
    %v1262 = vrcp.pop %v1236
    %v1263 = vmul.f32 1.0, %v1262
    %v1264 = vrcp.pop %v1237
    %v1265 = vmul.f32 1.0, %v1264
    %v1266 = vrcp.pop %v1238
    %v1267 = vmul.f32 1.0, %v1266
    %v1268 = vrcp.pop %v1239
    %v1269 = vmul.f32 1.0, %v1268
    %v1270 = vrcp.pop %v1240
    %v1271 = vmul.f32 1.0, %v1270
    %v1272 = vrcp.pop %v1241
    %v1273 = vmul.f32 1.0, %v1272
    %v1274 = vsub.f32 %v1243, 0.5
    %v1275 = vsub.f32 %v1245, 0.5
    %v1276 = vsub.f32 %v1247, 0.5
    %v1277 = vsub.f32 %v1249, 0.5
    %v1278 = vsub.f32 %v1251, 0.5
    %v1279 = vsub.f32 %v1253, 0.5
    %v1280 = vsub.f32 %v1255, 0.5
    %v1281 = vsub.f32 %v1257, 0.5
    %v1282 = vsub.f32 %v1259, 0.5
    %v1283 = vsub.f32 %v1261, 0.5
    %v1284 = vsub.f32 %v1263, 0.5
    %v1285 = vsub.f32 %v1265, 0.5
    %v1286 = vsub.f32 %v1267, 0.5
    %v1287 = vsub.f32 %v1269, 0.5
    %v1288 = vsub.f32 %v1271, 0.5
    %v1289 = vsub.f32 %v1273, 0.5
    %1290 = vmatprep.subr.mxu0 0.0
    %v1291 = vand.u32 %v1289, 4294901760
    %1292 = vmatpush1.msra.mxu0 %v1291
    %1293 = vmatprep.subr.mxu0 0.0
    %v1294 = vand.u32 %v1288, 4294901760
    %1295 = vmatpush1.msra.mxu0 %v1294
    %1296 = vmatprep.subr.mxu0 0.0
    %v1297 = vand.u32 %v1287, 4294901760
    %1298 = vmatpush1.msra.mxu0 %v1297
    %1299 = vmatprep.subr.mxu0 0.0
    %v1300 = vand.u32 %v1286, 4294901760
    %1301 = vmatpush1.msra.mxu0 %v1300
    %1302 = vmatprep.subr.mxu0 0.0
    %v1303 = vand.u32 %v1285, 4294901760
    %1304 = vmatpush1.msra.mxu0 %v1303
    %1305 = vmatprep.subr.mxu0 0.0
    %v1306 = vand.u32 %v1284, 4294901760
    %1307 = vmatpush1.msra.mxu0 %v1306
    %1308 = vmatprep.subr.mxu0 0.0
    %v1309 = vand.u32 %v1283, 4294901760
    %1310 = vmatpush1.msra.mxu0 %v1309
    %1311 = vmatprep.subr.mxu0 0.0
    %v1312 = vand.u32 %v1282, 4294901760
    %1313 = vmatpush1.msra.mxu0 %v1312
    %1314 = vmatprep.subr.mxu0 0.0
    %v1315 = vand.u32 %v1281, 4294901760
    %1316 = vmatpush1.msra.mxu0 %v1315
    %1317 = vmatprep.subr.mxu0 0.0
    %v1318 = vand.u32 %v1280, 4294901760
    %1319 = vmatpush1.msra.mxu0 %v1318
    %1320 = vmatprep.subr.mxu0 0.0
    %v1321 = vand.u32 %v1279, 4294901760
    %1322 = vmatpush1.msra.mxu0 %v1321
    %1323 = vmatprep.subr.mxu0 0.0
    %v1324 = vand.u32 %v1278, 4294901760
    %1325 = vmatpush1.msra.mxu0 %v1324
    %1326 = vmatprep.subr.mxu0 0.0
    %v1327 = vand.u32 %v1277, 4294901760
    %1328 = vmatpush1.msra.mxu0 %v1327
    %1329 = vmatprep.subr.mxu0 0.0
    %v1330 = vand.u32 %v1276, 4294901760
    %1331 = vmatpush1.msra.mxu0 %v1330
    %1332 = vmatprep.subr.mxu0 0.0
    %v1333 = vand.u32 %v1275, 4294901760
    %1334 = vmatpush1.msra.mxu0 %v1333
    %1335 = vmatprep.subr.mxu0 0.0
    %v1336 = vand.u32 %v1274, 4294901760
    %1337 = vmatpush1.msra.mxu0 %v1336
    %1338 = vmatprep.subr.mxu0 0.0
    %1339 = vmatpush2.msra.mxu0 0.0
    %1340 = vmatprep.subr.mxu0 0.0
    %1341 = vmatpush2.msra.mxu0 0.0
    %1342 = vmatprep.subr.mxu0 0.0
    %1343 = vmatpush2.msra.mxu0 0.0
    %1344 = vmatprep.subr.mxu0 0.0
    %1345 = vmatpush2.msra.mxu0 0.0
    %1346 = vmatprep.subr.mxu0 0.0
    %1347 = vmatpush2.msra.mxu0 0.0
    %1348 = vmatprep.subr.mxu0 0.0
    %1349 = vmatpush2.msra.mxu0 0.0
    %1350 = vmatprep.subr.mxu0 0.0
    %1351 = vmatpush2.msra.mxu0 0.0
    %1352 = vmatprep.subr.mxu0 0.0
    %1353 = vmatpush2.msra.mxu0 0.0
    %1354 = vmatprep.subr.mxu0 0.0
    %1355 = vmatpush2.msra.mxu0 0.0
    %1356 = vmatprep.subr.mxu0 0.0
    %1357 = vmatpush2.msra.mxu0 0.0
    %1358 = vmatprep.subr.mxu0 0.0
    %1359 = vmatpush2.msra.mxu0 0.0
    %1360 = vmatprep.subr.mxu0 0.0
    %1361 = vmatpush2.msra.mxu0 0.0
    %1362 = vmatprep.subr.mxu0 0.0
    %1363 = vmatpush2.msra.mxu0 0.0
    %1364 = vmatprep.subr.mxu0 0.0
    %1365 = vmatpush2.msra.mxu0 0.0
    %1366 = vmatprep.subr.mxu0 0.0
    %1367 = vmatpush2.msra.mxu0 0.0
    %1368 = vmatprep.subr.mxu0 0.0
    %1369 = vmatpush2.msra.mxu0 0.0
    %1370 = vmatprep.mubr.f32.mxu0 0.0
    %v1371 = vand.u32 %v35, 4294901760
    %v1372 = vsub.f32 %v35, %v1371
    %v1373 = vand.u32 %v1372, 4294901760
    %v1374 = vsub.f32 %v1372, %v1373
    %v1375 = vand.u32 %v1374, 4294901760
    %1376 = vmatmul.mubr.f32.gmra.mxu0 %v1375
    %v1377 = vpop.f32.mrf.mxu0
    %v1378 = vadd.f32 0.0, %v1377
    %v1379 = vpop.f32.mrf.mxu0
    %1380 = vmatprep.mubr.f32.mxu0 0.0
    %v1381 = vand.u32 %v36, 4294901760
    %v1382 = vsub.f32 %v36, %v1381
    %v1383 = vand.u32 %v1382, 4294901760
    %v1384 = vsub.f32 %v1382, %v1383
    %v1385 = vand.u32 %v1384, 4294901760
    %1386 = vmatmul.mubr.f32.gmra.mxu0 %v1385
    %v1387 = vpop.f32.mrf.mxu0
    %v1388 = vadd.f32 0.0, %v1387
    %v1389 = vpop.f32.mrf.mxu0
    %1390 = vdwg.mxu0
    %1391 = vmatprep.subr.mxu0 0.0
    %v1392 = vand.u32 %v1289, 4294901760
    %v1393 = vsub.f32 %v1289, %v1392
    %v1394 = vand.u32 %v1393, 4294901760
    %v1395 = vsub.f32 %v1393, %v1394
    %v1396 = vand.u32 %v1395, 4294901760
    %1397 = vmatpush1.msra.mxu0 %v1396
    %1398 = vmatprep.subr.mxu0 0.0
    %v1399 = vand.u32 %v1288, 4294901760
    %v1400 = vsub.f32 %v1288, %v1399
    %v1401 = vand.u32 %v1400, 4294901760
    %v1402 = vsub.f32 %v1400, %v1401
    %v1403 = vand.u32 %v1402, 4294901760
    %1404 = vmatpush1.msra.mxu0 %v1403
    %1405 = vmatprep.subr.mxu0 0.0
    %v1406 = vand.u32 %v1287, 4294901760
    %v1407 = vsub.f32 %v1287, %v1406
    %v1408 = vand.u32 %v1407, 4294901760
    %v1409 = vsub.f32 %v1407, %v1408
    %v1410 = vand.u32 %v1409, 4294901760
    %1411 = vmatpush1.msra.mxu0 %v1410
    %1412 = vmatprep.subr.mxu0 0.0
    %v1413 = vand.u32 %v1286, 4294901760
    %v1414 = vsub.f32 %v1286, %v1413
    %v1415 = vand.u32 %v1414, 4294901760
    %v1416 = vsub.f32 %v1414, %v1415
    %v1417 = vand.u32 %v1416, 4294901760
    %1418 = vmatpush1.msra.mxu0 %v1417
    %1419 = vmatprep.subr.mxu0 0.0
    %v1420 = vand.u32 %v1285, 4294901760
    %v1421 = vsub.f32 %v1285, %v1420
    %v1422 = vand.u32 %v1421, 4294901760
    %v1423 = vsub.f32 %v1421, %v1422
    %v1424 = vand.u32 %v1423, 4294901760
    %1425 = vmatpush1.msra.mxu0 %v1424
    %1426 = vmatprep.subr.mxu0 0.0
    %v1427 = vand.u32 %v1284, 4294901760
    %v1428 = vsub.f32 %v1284, %v1427
    %v1429 = vand.u32 %v1428, 4294901760
    %v1430 = vsub.f32 %v1428, %v1429
    %v1431 = vand.u32 %v1430, 4294901760
    %1432 = vmatpush1.msra.mxu0 %v1431
    %1433 = vmatprep.subr.mxu0 0.0
    %v1434 = vand.u32 %v1283, 4294901760
    %v1435 = vsub.f32 %v1283, %v1434
    %v1436 = vand.u32 %v1435, 4294901760
    %v1437 = vsub.f32 %v1435, %v1436
    %v1438 = vand.u32 %v1437, 4294901760
    %1439 = vmatpush1.msra.mxu0 %v1438
    %1440 = vmatprep.subr.mxu0 0.0
    %v1441 = vand.u32 %v1282, 4294901760
    %v1442 = vsub.f32 %v1282, %v1441
    %v1443 = vand.u32 %v1442, 4294901760
    %v1444 = vsub.f32 %v1442, %v1443
    %v1445 = vand.u32 %v1444, 4294901760
    %1446 = vmatpush1.msra.mxu0 %v1445
    %1447 = vmatprep.subr.mxu0 0.0
    %v1448 = vand.u32 %v1281, 4294901760
    %v1449 = vsub.f32 %v1281, %v1448
    %v1450 = vand.u32 %v1449, 4294901760
    %v1451 = vsub.f32 %v1449, %v1450
    %v1452 = vand.u32 %v1451, 4294901760
    %1453 = vmatpush1.msra.mxu0 %v1452
    %1454 = vmatprep.subr.mxu0 0.0
    %v1455 = vand.u32 %v1280, 4294901760
    %v1456 = vsub.f32 %v1280, %v1455
    %v1457 = vand.u32 %v1456, 4294901760
    %v1458 = vsub.f32 %v1456, %v1457
    %v1459 = vand.u32 %v1458, 4294901760
    %1460 = vmatpush1.msra.mxu0 %v1459
    %1461 = vmatprep.subr.mxu0 0.0
    %v1462 = vand.u32 %v1279, 4294901760
    %v1463 = vsub.f32 %v1279, %v1462
    %v1464 = vand.u32 %v1463, 4294901760
    %v1465 = vsub.f32 %v1463, %v1464
    %v1466 = vand.u32 %v1465, 4294901760
    %1467 = vmatpush1.msra.mxu0 %v1466
    %1468 = vmatprep.subr.mxu0 0.0
    %v1469 = vand.u32 %v1278, 4294901760
    %v1470 = vsub.f32 %v1278, %v1469
    %v1471 = vand.u32 %v1470, 4294901760
    %v1472 = vsub.f32 %v1470, %v1471
    %v1473 = vand.u32 %v1472, 4294901760
    %1474 = vmatpush1.msra.mxu0 %v1473
    %1475 = vmatprep.subr.mxu0 0.0
    %v1476 = vand.u32 %v1277, 4294901760
    %v1477 = vsub.f32 %v1277, %v1476
    %v1478 = vand.u32 %v1477, 4294901760
    %v1479 = vsub.f32 %v1477, %v1478
    %v1480 = vand.u32 %v1479, 4294901760
    %1481 = vmatpush1.msra.mxu0 %v1480
    %1482 = vmatprep.subr.mxu0 0.0
    %v1483 = vand.u32 %v1276, 4294901760
    %v1484 = vsub.f32 %v1276, %v1483
    %v1485 = vand.u32 %v1484, 4294901760
    %v1486 = vsub.f32 %v1484, %v1485
    %v1487 = vand.u32 %v1486, 4294901760
    %1488 = vmatpush1.msra.mxu0 %v1487
    %1489 = vmatprep.subr.mxu0 0.0
    %v1490 = vand.u32 %v1275, 4294901760
    %v1491 = vsub.f32 %v1275, %v1490
    %v1492 = vand.u32 %v1491, 4294901760
    %v1493 = vsub.f32 %v1491, %v1492
    %v1494 = vand.u32 %v1493, 4294901760
    %1495 = vmatpush1.msra.mxu0 %v1494
    %1496 = vmatprep.subr.mxu0 0.0
    %v1497 = vand.u32 %v1274, 4294901760
    %v1498 = vsub.f32 %v1274, %v1497
    %v1499 = vand.u32 %v1498, 4294901760
    %v1500 = vsub.f32 %v1498, %v1499
    %v1501 = vand.u32 %v1500, 4294901760
    %1502 = vmatpush1.msra.mxu0 %v1501
    %1503 = vmatprep.subr.mxu0 0.0
    %1504 = vmatpush2.msra.mxu0 0.0
    %1505 = vmatprep.subr.mxu0 0.0
    %1506 = vmatpush2.msra.mxu0 0.0
    %1507 = vmatprep.subr.mxu0 0.0
    %1508 = vmatpush2.msra.mxu0 0.0
    %1509 = vmatprep.subr.mxu0 0.0
    %1510 = vmatpush2.msra.mxu0 0.0
    %1511 = vmatprep.subr.mxu0 0.0
    %1512 = vmatpush2.msra.mxu0 0.0
    %1513 = vmatprep.subr.mxu0 0.0
    %1514 = vmatpush2.msra.mxu0 0.0
    %1515 = vmatprep.subr.mxu0 0.0
    %1516 = vmatpush2.msra.mxu0 0.0
    %1517 = vmatprep.subr.mxu0 0.0
    %1518 = vmatpush2.msra.mxu0 0.0
    %1519 = vmatprep.subr.mxu0 0.0
    %1520 = vmatpush2.msra.mxu0 0.0
    %1521 = vmatprep.subr.mxu0 0.0
    %1522 = vmatpush2.msra.mxu0 0.0
    %1523 = vmatprep.subr.mxu0 0.0
    %1524 = vmatpush2.msra.mxu0 0.0
    %1525 = vmatprep.subr.mxu0 0.0
    %1526 = vmatpush2.msra.mxu0 0.0
    %1527 = vmatprep.subr.mxu0 0.0
    %1528 = vmatpush2.msra.mxu0 0.0
    %1529 = vmatprep.subr.mxu0 0.0
    %1530 = vmatpush2.msra.mxu0 0.0
    %1531 = vmatprep.subr.mxu0 0.0
    %1532 = vmatpush2.msra.mxu0 0.0
    %1533 = vmatprep.subr.mxu0 0.0
    %1534 = vmatpush2.msra.mxu0 0.0
    %1535 = vmatprep.mubr.f32.mxu0 0.0
    %v1536 = vand.u32 %v35, 4294901760
    %1537 = vmatmul.mubr.f32.gmra.mxu0 %v1536
    %v1538 = vpop.f32.mrf.mxu0
    %v1539 = vadd.f32 %v1378, %v1538
    %v1540 = vpop.f32.mrf.mxu0
    %1541 = vmatprep.mubr.f32.mxu0 0.0
    %v1542 = vand.u32 %v36, 4294901760
    %1543 = vmatmul.mubr.f32.gmra.mxu0 %v1542
    %v1544 = vpop.f32.mrf.mxu0
    %v1545 = vadd.f32 %v1388, %v1544
    %v1546 = vpop.f32.mrf.mxu0
    %1547 = vdwg.mxu0
    %1548 = vmatprep.subr.mxu0 0.0
    %v1549 = vand.u32 %v1289, 4294901760
    %v1550 = vsub.f32 %v1289, %v1549
    %1551 = vmatpush1.msra.mxu0 %v1550
    %1552 = vmatprep.subr.mxu0 0.0
    %v1553 = vand.u32 %v1288, 4294901760
    %v1554 = vsub.f32 %v1288, %v1553
    %1555 = vmatpush1.msra.mxu0 %v1554
    %1556 = vmatprep.subr.mxu0 0.0
    %v1557 = vand.u32 %v1287, 4294901760
    %v1558 = vsub.f32 %v1287, %v1557
    %1559 = vmatpush1.msra.mxu0 %v1558
    %1560 = vmatprep.subr.mxu0 0.0
    %v1561 = vand.u32 %v1286, 4294901760
    %v1562 = vsub.f32 %v1286, %v1561
    %1563 = vmatpush1.msra.mxu0 %v1562
    %1564 = vmatprep.subr.mxu0 0.0
    %v1565 = vand.u32 %v1285, 4294901760
    %v1566 = vsub.f32 %v1285, %v1565
    %1567 = vmatpush1.msra.mxu0 %v1566
    %1568 = vmatprep.subr.mxu0 0.0
    %v1569 = vand.u32 %v1284, 4294901760
    %v1570 = vsub.f32 %v1284, %v1569
    %1571 = vmatpush1.msra.mxu0 %v1570
    %1572 = vmatprep.subr.mxu0 0.0
    %v1573 = vand.u32 %v1283, 4294901760
    %v1574 = vsub.f32 %v1283, %v1573
    %1575 = vmatpush1.msra.mxu0 %v1574
    %1576 = vmatprep.subr.mxu0 0.0
    %v1577 = vand.u32 %v1282, 4294901760
    %v1578 = vsub.f32 %v1282, %v1577
    %1579 = vmatpush1.msra.mxu0 %v1578
    %1580 = vmatprep.subr.mxu0 0.0
    %v1581 = vand.u32 %v1281, 4294901760
    %v1582 = vsub.f32 %v1281, %v1581
    %1583 = vmatpush1.msra.mxu0 %v1582
    %1584 = vmatprep.subr.mxu0 0.0
    %v1585 = vand.u32 %v1280, 4294901760
    %v1586 = vsub.f32 %v1280, %v1585
    %1587 = vmatpush1.msra.mxu0 %v1586
    %1588 = vmatprep.subr.mxu0 0.0
    %v1589 = vand.u32 %v1279, 4294901760
    %v1590 = vsub.f32 %v1279, %v1589
    %1591 = vmatpush1.msra.mxu0 %v1590
    %1592 = vmatprep.subr.mxu0 0.0
    %v1593 = vand.u32 %v1278, 4294901760
    %v1594 = vsub.f32 %v1278, %v1593
    %1595 = vmatpush1.msra.mxu0 %v1594
    %1596 = vmatprep.subr.mxu0 0.0
    %v1597 = vand.u32 %v1277, 4294901760
    %v1598 = vsub.f32 %v1277, %v1597
    %1599 = vmatpush1.msra.mxu0 %v1598
    %1600 = vmatprep.subr.mxu0 0.0
    %v1601 = vand.u32 %v1276, 4294901760
    %v1602 = vsub.f32 %v1276, %v1601
    %1603 = vmatpush1.msra.mxu0 %v1602
    %1604 = vmatprep.subr.mxu0 0.0
    %v1605 = vand.u32 %v1275, 4294901760
    %v1606 = vsub.f32 %v1275, %v1605
    %1607 = vmatpush1.msra.mxu0 %v1606
    %1608 = vmatprep.subr.mxu0 0.0
    %v1609 = vand.u32 %v1274, 4294901760
    %v1610 = vsub.f32 %v1274, %v1609
    %1611 = vmatpush1.msra.mxu0 %v1610
    %1612 = vmatprep.subr.mxu0 0.0
    %1613 = vmatpush2.msra.mxu0 0.0
    %1614 = vmatprep.subr.mxu0 0.0
    %1615 = vmatpush2.msra.mxu0 0.0
    %1616 = vmatprep.subr.mxu0 0.0
    %1617 = vmatpush2.msra.mxu0 0.0
    %1618 = vmatprep.subr.mxu0 0.0
    %1619 = vmatpush2.msra.mxu0 0.0
    %1620 = vmatprep.subr.mxu0 0.0
    %1621 = vmatpush2.msra.mxu0 0.0
    %1622 = vmatprep.subr.mxu0 0.0
    %1623 = vmatpush2.msra.mxu0 0.0
    %1624 = vmatprep.subr.mxu0 0.0
    %1625 = vmatpush2.msra.mxu0 0.0
    %1626 = vmatprep.subr.mxu0 0.0
    %1627 = vmatpush2.msra.mxu0 0.0
    %1628 = vmatprep.subr.mxu0 0.0
    %1629 = vmatpush2.msra.mxu0 0.0
    %1630 = vmatprep.subr.mxu0 0.0
    %1631 = vmatpush2.msra.mxu0 0.0
    %1632 = vmatprep.subr.mxu0 0.0
    %1633 = vmatpush2.msra.mxu0 0.0
    %1634 = vmatprep.subr.mxu0 0.0
    %1635 = vmatpush2.msra.mxu0 0.0
    %1636 = vmatprep.subr.mxu0 0.0
    %1637 = vmatpush2.msra.mxu0 0.0
    %1638 = vmatprep.subr.mxu0 0.0
    %1639 = vmatpush2.msra.mxu0 0.0
    %1640 = vmatprep.subr.mxu0 0.0
    %1641 = vmatpush2.msra.mxu0 0.0
    %1642 = vmatprep.subr.mxu0 0.0
    %1643 = vmatpush2.msra.mxu0 0.0
    %1644 = vmatprep.mubr.f32.mxu0 0.0
    %v1645 = vand.u32 %v35, 4294901760
    %v1646 = vsub.f32 %v35, %v1645
    %1647 = vmatmul.mubr.f32.gmra.mxu0 %v1646
    %v1648 = vpop.f32.mrf.mxu0
    %v1649 = vadd.f32 %v1539, %v1648
    %v1650 = vpop.f32.mrf.mxu0
    %1651 = vmatprep.mubr.f32.mxu0 0.0
    %v1652 = vand.u32 %v36, 4294901760
    %v1653 = vsub.f32 %v36, %v1652
    %1654 = vmatmul.mubr.f32.gmra.mxu0 %v1653
    %v1655 = vpop.f32.mrf.mxu0
    %v1656 = vadd.f32 %v1545, %v1655
    %v1657 = vpop.f32.mrf.mxu0
    %1658 = vdwg.mxu0
    %1659 = vmatprep.subr.mxu0 0.0
    %v1660 = vand.u32 %v1289, 4294901760
    %1661 = vmatpush1.msra.mxu0 %v1660
    %1662 = vmatprep.subr.mxu0 0.0
    %v1663 = vand.u32 %v1288, 4294901760
    %1664 = vmatpush1.msra.mxu0 %v1663
    %1665 = vmatprep.subr.mxu0 0.0
    %v1666 = vand.u32 %v1287, 4294901760
    %1667 = vmatpush1.msra.mxu0 %v1666
    %1668 = vmatprep.subr.mxu0 0.0
    %v1669 = vand.u32 %v1286, 4294901760
    %1670 = vmatpush1.msra.mxu0 %v1669
    %1671 = vmatprep.subr.mxu0 0.0
    %v1672 = vand.u32 %v1285, 4294901760
    %1673 = vmatpush1.msra.mxu0 %v1672
    %1674 = vmatprep.subr.mxu0 0.0
    %v1675 = vand.u32 %v1284, 4294901760
    %1676 = vmatpush1.msra.mxu0 %v1675
    %1677 = vmatprep.subr.mxu0 0.0
    %v1678 = vand.u32 %v1283, 4294901760
    %1679 = vmatpush1.msra.mxu0 %v1678
    %1680 = vmatprep.subr.mxu0 0.0
    %v1681 = vand.u32 %v1282, 4294901760
    %1682 = vmatpush1.msra.mxu0 %v1681
    %1683 = vmatprep.subr.mxu0 0.0
    %v1684 = vand.u32 %v1281, 4294901760
    %1685 = vmatpush1.msra.mxu0 %v1684
    %1686 = vmatprep.subr.mxu0 0.0
    %v1687 = vand.u32 %v1280, 4294901760
    %1688 = vmatpush1.msra.mxu0 %v1687
    %1689 = vmatprep.subr.mxu0 0.0
    %v1690 = vand.u32 %v1279, 4294901760
    %1691 = vmatpush1.msra.mxu0 %v1690
    %1692 = vmatprep.subr.mxu0 0.0
    %v1693 = vand.u32 %v1278, 4294901760
    %1694 = vmatpush1.msra.mxu0 %v1693
    %1695 = vmatprep.subr.mxu0 0.0
    %v1696 = vand.u32 %v1277, 4294901760
    %1697 = vmatpush1.msra.mxu0 %v1696
    %1698 = vmatprep.subr.mxu0 0.0
    %v1699 = vand.u32 %v1276, 4294901760
    %1700 = vmatpush1.msra.mxu0 %v1699
    %1701 = vmatprep.subr.mxu0 0.0
    %v1702 = vand.u32 %v1275, 4294901760
    %1703 = vmatpush1.msra.mxu0 %v1702
    %1704 = vmatprep.subr.mxu0 0.0
    %v1705 = vand.u32 %v1274, 4294901760
    %1706 = vmatpush1.msra.mxu0 %v1705
    %1707 = vmatprep.subr.mxu0 0.0
    %1708 = vmatpush2.msra.mxu0 0.0
    %1709 = vmatprep.subr.mxu0 0.0
    %1710 = vmatpush2.msra.mxu0 0.0
    %1711 = vmatprep.subr.mxu0 0.0
    %1712 = vmatpush2.msra.mxu0 0.0
    %1713 = vmatprep.subr.mxu0 0.0
    %1714 = vmatpush2.msra.mxu0 0.0
    %1715 = vmatprep.subr.mxu0 0.0
    %1716 = vmatpush2.msra.mxu0 0.0
    %1717 = vmatprep.subr.mxu0 0.0
    %1718 = vmatpush2.msra.mxu0 0.0
    %1719 = vmatprep.subr.mxu0 0.0
    %1720 = vmatpush2.msra.mxu0 0.0
    %1721 = vmatprep.subr.mxu0 0.0
    %1722 = vmatpush2.msra.mxu0 0.0
    %1723 = vmatprep.subr.mxu0 0.0
    %1724 = vmatpush2.msra.mxu0 0.0
    %1725 = vmatprep.subr.mxu0 0.0
    %1726 = vmatpush2.msra.mxu0 0.0
    %1727 = vmatprep.subr.mxu0 0.0
    %1728 = vmatpush2.msra.mxu0 0.0
    %1729 = vmatprep.subr.mxu0 0.0
    %1730 = vmatpush2.msra.mxu0 0.0
    %1731 = vmatprep.subr.mxu0 0.0
    %1732 = vmatpush2.msra.mxu0 0.0
    %1733 = vmatprep.subr.mxu0 0.0
    %1734 = vmatpush2.msra.mxu0 0.0
    %1735 = vmatprep.subr.mxu0 0.0
    %1736 = vmatpush2.msra.mxu0 0.0
    %1737 = vmatprep.subr.mxu0 0.0
    %1738 = vmatpush2.msra.mxu0 0.0
    %1739 = vmatprep.mubr.f32.mxu0 0.0
    %v1740 = vand.u32 %v35, 4294901760
    %v1741 = vsub.f32 %v35, %v1740
    %v1742 = vand.u32 %v1741, 4294901760
    %1743 = vmatmul.mubr.f32.gmra.mxu0 %v1742
    %v1744 = vpop.f32.mrf.mxu0
    %v1745 = vadd.f32 %v1649, %v1744
    %v1746 = vpop.f32.mrf.mxu0
    %1747 = vmatprep.mubr.f32.mxu0 0.0
    %v1748 = vand.u32 %v36, 4294901760
    %v1749 = vsub.f32 %v36, %v1748
    %v1750 = vand.u32 %v1749, 4294901760
    %1751 = vmatmul.mubr.f32.gmra.mxu0 %v1750
    %v1752 = vpop.f32.mrf.mxu0
    %v1753 = vadd.f32 %v1656, %v1752
    %v1754 = vpop.f32.mrf.mxu0
    %1755 = vdwg.mxu0
    %1756 = vmatprep.subr.mxu0 0.0
    %v1757 = vand.u32 %v1289, 4294901760
    %v1758 = vsub.f32 %v1289, %v1757
    %v1759 = vand.u32 %v1758, 4294901760
    %1760 = vmatpush1.msra.mxu0 %v1759
    %1761 = vmatprep.subr.mxu0 0.0
    %v1762 = vand.u32 %v1288, 4294901760
    %v1763 = vsub.f32 %v1288, %v1762
    %v1764 = vand.u32 %v1763, 4294901760
    %1765 = vmatpush1.msra.mxu0 %v1764
    %1766 = vmatprep.subr.mxu0 0.0
    %v1767 = vand.u32 %v1287, 4294901760
    %v1768 = vsub.f32 %v1287, %v1767
    %v1769 = vand.u32 %v1768, 4294901760
    %1770 = vmatpush1.msra.mxu0 %v1769
    %1771 = vmatprep.subr.mxu0 0.0
    %v1772 = vand.u32 %v1286, 4294901760
    %v1773 = vsub.f32 %v1286, %v1772
    %v1774 = vand.u32 %v1773, 4294901760
    %1775 = vmatpush1.msra.mxu0 %v1774
    %1776 = vmatprep.subr.mxu0 0.0
    %v1777 = vand.u32 %v1285, 4294901760
    %v1778 = vsub.f32 %v1285, %v1777
    %v1779 = vand.u32 %v1778, 4294901760
    %1780 = vmatpush1.msra.mxu0 %v1779
    %1781 = vmatprep.subr.mxu0 0.0
    %v1782 = vand.u32 %v1284, 4294901760
    %v1783 = vsub.f32 %v1284, %v1782
    %v1784 = vand.u32 %v1783, 4294901760
    %1785 = vmatpush1.msra.mxu0 %v1784
    %1786 = vmatprep.subr.mxu0 0.0
    %v1787 = vand.u32 %v1283, 4294901760
    %v1788 = vsub.f32 %v1283, %v1787
    %v1789 = vand.u32 %v1788, 4294901760
    %1790 = vmatpush1.msra.mxu0 %v1789
    %1791 = vmatprep.subr.mxu0 0.0
    %v1792 = vand.u32 %v1282, 4294901760
    %v1793 = vsub.f32 %v1282, %v1792
    %v1794 = vand.u32 %v1793, 4294901760
    %1795 = vmatpush1.msra.mxu0 %v1794
    %1796 = vmatprep.subr.mxu0 0.0
    %v1797 = vand.u32 %v1281, 4294901760
    %v1798 = vsub.f32 %v1281, %v1797
    %v1799 = vand.u32 %v1798, 4294901760
    %1800 = vmatpush1.msra.mxu0 %v1799
    %1801 = vmatprep.subr.mxu0 0.0
    %v1802 = vand.u32 %v1280, 4294901760
    %v1803 = vsub.f32 %v1280, %v1802
    %v1804 = vand.u32 %v1803, 4294901760
    %1805 = vmatpush1.msra.mxu0 %v1804
    %1806 = vmatprep.subr.mxu0 0.0
    %v1807 = vand.u32 %v1279, 4294901760
    %v1808 = vsub.f32 %v1279, %v1807
    %v1809 = vand.u32 %v1808, 4294901760
    %1810 = vmatpush1.msra.mxu0 %v1809
    %1811 = vmatprep.subr.mxu0 0.0
    %v1812 = vand.u32 %v1278, 4294901760
    %v1813 = vsub.f32 %v1278, %v1812
    %v1814 = vand.u32 %v1813, 4294901760
    %1815 = vmatpush1.msra.mxu0 %v1814
    %1816 = vmatprep.subr.mxu0 0.0
    %v1817 = vand.u32 %v1277, 4294901760
    %v1818 = vsub.f32 %v1277, %v1817
    %v1819 = vand.u32 %v1818, 4294901760
    %1820 = vmatpush1.msra.mxu0 %v1819
    %1821 = vmatprep.subr.mxu0 0.0
    %v1822 = vand.u32 %v1276, 4294901760
    %v1823 = vsub.f32 %v1276, %v1822
    %v1824 = vand.u32 %v1823, 4294901760
    %1825 = vmatpush1.msra.mxu0 %v1824
    %1826 = vmatprep.subr.mxu0 0.0
    %v1827 = vand.u32 %v1275, 4294901760
    %v1828 = vsub.f32 %v1275, %v1827
    %v1829 = vand.u32 %v1828, 4294901760
    %1830 = vmatpush1.msra.mxu0 %v1829
    %1831 = vmatprep.subr.mxu0 0.0
    %v1832 = vand.u32 %v1274, 4294901760
    %v1833 = vsub.f32 %v1274, %v1832
    %v1834 = vand.u32 %v1833, 4294901760
    %1835 = vmatpush1.msra.mxu0 %v1834
    %1836 = vmatprep.subr.mxu0 0.0
    %1837 = vmatpush2.msra.mxu0 0.0
    %1838 = vmatprep.subr.mxu0 0.0
    %1839 = vmatpush2.msra.mxu0 0.0
    %1840 = vmatprep.subr.mxu0 0.0
    %1841 = vmatpush2.msra.mxu0 0.0
    %1842 = vmatprep.subr.mxu0 0.0
    %1843 = vmatpush2.msra.mxu0 0.0
    %1844 = vmatprep.subr.mxu0 0.0
    %1845 = vmatpush2.msra.mxu0 0.0
    %1846 = vmatprep.subr.mxu0 0.0
    %1847 = vmatpush2.msra.mxu0 0.0
    %1848 = vmatprep.subr.mxu0 0.0
    %1849 = vmatpush2.msra.mxu0 0.0
    %1850 = vmatprep.subr.mxu0 0.0
    %1851 = vmatpush2.msra.mxu0 0.0
    %1852 = vmatprep.subr.mxu0 0.0
    %1853 = vmatpush2.msra.mxu0 0.0
    %1854 = vmatprep.subr.mxu0 0.0
    %1855 = vmatpush2.msra.mxu0 0.0
    %1856 = vmatprep.subr.mxu0 0.0
    %1857 = vmatpush2.msra.mxu0 0.0
    %1858 = vmatprep.subr.mxu0 0.0
    %1859 = vmatpush2.msra.mxu0 0.0
    %1860 = vmatprep.subr.mxu0 0.0
    %1861 = vmatpush2.msra.mxu0 0.0
    %1862 = vmatprep.subr.mxu0 0.0
    %1863 = vmatpush2.msra.mxu0 0.0
    %1864 = vmatprep.subr.mxu0 0.0
    %1865 = vmatpush2.msra.mxu0 0.0
    %1866 = vmatprep.subr.mxu0 0.0
    %1867 = vmatpush2.msra.mxu0 0.0
    %1868 = vmatprep.mubr.f32.mxu0 0.0
    %v1869 = vand.u32 %v35, 4294901760
    %1870 = vmatmul.mubr.f32.gmra.mxu0 %v1869
    %v1871 = vpop.f32.mrf.mxu0
    %v1872 = vadd.f32 %v1745, %v1871
    %v1873 = vpop.f32.mrf.mxu0
    %1874 = vmatprep.mubr.f32.mxu0 0.0
    %v1875 = vand.u32 %v36, 4294901760
    %1876 = vmatmul.mubr.f32.gmra.mxu0 %v1875
    %v1877 = vpop.f32.mrf.mxu0
    %v1878 = vadd.f32 %v1753, %v1877
    %v1879 = vpop.f32.mrf.mxu0
    %1880 = vdwg.mxu0
    %1881 = vmatprep.subr.mxu0 0.0
    %v1882 = vand.u32 %v1289, 4294901760
    %1883 = vmatpush1.msra.mxu0 %v1882
    %1884 = vmatprep.subr.mxu0 0.0
    %v1885 = vand.u32 %v1288, 4294901760
    %1886 = vmatpush1.msra.mxu0 %v1885
    %1887 = vmatprep.subr.mxu0 0.0
    %v1888 = vand.u32 %v1287, 4294901760
    %1889 = vmatpush1.msra.mxu0 %v1888
    %1890 = vmatprep.subr.mxu0 0.0
    %v1891 = vand.u32 %v1286, 4294901760
    %1892 = vmatpush1.msra.mxu0 %v1891
    %1893 = vmatprep.subr.mxu0 0.0
    %v1894 = vand.u32 %v1285, 4294901760
    %1895 = vmatpush1.msra.mxu0 %v1894
    %1896 = vmatprep.subr.mxu0 0.0
    %v1897 = vand.u32 %v1284, 4294901760
    %1898 = vmatpush1.msra.mxu0 %v1897
    %1899 = vmatprep.subr.mxu0 0.0
    %v1900 = vand.u32 %v1283, 4294901760
    %1901 = vmatpush1.msra.mxu0 %v1900
    %1902 = vmatprep.subr.mxu0 0.0
    %v1903 = vand.u32 %v1282, 4294901760
    %1904 = vmatpush1.msra.mxu0 %v1903
    %1905 = vmatprep.subr.mxu0 0.0
    %v1906 = vand.u32 %v1281, 4294901760
    %1907 = vmatpush1.msra.mxu0 %v1906
    %1908 = vmatprep.subr.mxu0 0.0
    %v1909 = vand.u32 %v1280, 4294901760
    %1910 = vmatpush1.msra.mxu0 %v1909
    %1911 = vmatprep.subr.mxu0 0.0
    %v1912 = vand.u32 %v1279, 4294901760
    %1913 = vmatpush1.msra.mxu0 %v1912
    %1914 = vmatprep.subr.mxu0 0.0
    %v1915 = vand.u32 %v1278, 4294901760
    %1916 = vmatpush1.msra.mxu0 %v1915
    %1917 = vmatprep.subr.mxu0 0.0
    %v1918 = vand.u32 %v1277, 4294901760
    %1919 = vmatpush1.msra.mxu0 %v1918
    %1920 = vmatprep.subr.mxu0 0.0
    %v1921 = vand.u32 %v1276, 4294901760
    %1922 = vmatpush1.msra.mxu0 %v1921
    %1923 = vmatprep.subr.mxu0 0.0
    %v1924 = vand.u32 %v1275, 4294901760
    %1925 = vmatpush1.msra.mxu0 %v1924
    %1926 = vmatprep.subr.mxu0 0.0
    %v1927 = vand.u32 %v1274, 4294901760
    %1928 = vmatpush1.msra.mxu0 %v1927
    %1929 = vmatprep.subr.mxu0 0.0
    %1930 = vmatpush2.msra.mxu0 0.0
    %1931 = vmatprep.subr.mxu0 0.0
    %1932 = vmatpush2.msra.mxu0 0.0
    %1933 = vmatprep.subr.mxu0 0.0
    %1934 = vmatpush2.msra.mxu0 0.0
    %1935 = vmatprep.subr.mxu0 0.0
    %1936 = vmatpush2.msra.mxu0 0.0
    %1937 = vmatprep.subr.mxu0 0.0
    %1938 = vmatpush2.msra.mxu0 0.0
    %1939 = vmatprep.subr.mxu0 0.0
    %1940 = vmatpush2.msra.mxu0 0.0
    %1941 = vmatprep.subr.mxu0 0.0
    %1942 = vmatpush2.msra.mxu0 0.0
    %1943 = vmatprep.subr.mxu0 0.0
    %1944 = vmatpush2.msra.mxu0 0.0
    %1945 = vmatprep.subr.mxu0 0.0
    %1946 = vmatpush2.msra.mxu0 0.0
    %1947 = vmatprep.subr.mxu0 0.0
    %1948 = vmatpush2.msra.mxu0 0.0
    %1949 = vmatprep.subr.mxu0 0.0
    %1950 = vmatpush2.msra.mxu0 0.0
    %1951 = vmatprep.subr.mxu0 0.0
    %1952 = vmatpush2.msra.mxu0 0.0
    %1953 = vmatprep.subr.mxu0 0.0
    %1954 = vmatpush2.msra.mxu0 0.0
    %1955 = vmatprep.subr.mxu0 0.0
    %1956 = vmatpush2.msra.mxu0 0.0
    %1957 = vmatprep.subr.mxu0 0.0
    %1958 = vmatpush2.msra.mxu0 0.0
    %1959 = vmatprep.subr.mxu0 0.0
    %1960 = vmatpush2.msra.mxu0 0.0
    %1961 = vmatprep.mubr.f32.mxu0 0.0
    %v1962 = vand.u32 %v35, 4294901760
    %1963 = vmatmul.mubr.f32.gmra.mxu0 %v1962
    %v1964 = vpop.f32.mrf.mxu0
    %v1965 = vadd.f32 %v1872, %v1964
    %v1966 = vpop.f32.mrf.mxu0
    %1967 = vmatprep.mubr.f32.mxu0 0.0
    %v1968 = vand.u32 %v36, 4294901760
    %1969 = vmatmul.mubr.f32.gmra.mxu0 %v1968
    %v1970 = vpop.f32.mrf.mxu0
    %v1971 = vadd.f32 %v1878, %v1970
    %v1972 = vpop.f32.mrf.mxu0
    %1973 = vdwg.mxu0
    %v1974 = vmul.f32 %v1274, %v1274
    %v1975 = vmul.f32 %v1275, %v1275
    %v1976 = vmul.f32 %v1276, %v1276
    %v1977 = vmul.f32 %v1277, %v1277
    %v1978 = vmul.f32 %v1278, %v1278
    %v1979 = vmul.f32 %v1279, %v1279
    %v1980 = vmul.f32 %v1280, %v1280
    %v1981 = vmul.f32 %v1281, %v1281
    %v1982 = vmul.f32 %v1282, %v1282
    %v1983 = vmul.f32 %v1283, %v1283
    %v1984 = vmul.f32 %v1284, %v1284
    %v1985 = vmul.f32 %v1285, %v1285
    %v1986 = vmul.f32 %v1286, %v1286
    %v1987 = vmul.f32 %v1287, %v1287
    %v1988 = vmul.f32 %v1288, %v1288
    %v1989 = vmul.f32 %v1289, %v1289
    %1990 = vmatprep.subr.mxu0 0.0
    %v1991 = vand.u32 %v1989, 4294901760
    %1992 = vmatpush1.msra.mxu0 %v1991
    %1993 = vmatprep.subr.mxu0 0.0
    %v1994 = vand.u32 %v1988, 4294901760
    %1995 = vmatpush1.msra.mxu0 %v1994
    %1996 = vmatprep.subr.mxu0 0.0
    %v1997 = vand.u32 %v1987, 4294901760
    %1998 = vmatpush1.msra.mxu0 %v1997
    %1999 = vmatprep.subr.mxu0 0.0
    %v2000 = vand.u32 %v1986, 4294901760
    %2001 = vmatpush1.msra.mxu0 %v2000
    %2002 = vmatprep.subr.mxu0 0.0
    %v2003 = vand.u32 %v1985, 4294901760
    %2004 = vmatpush1.msra.mxu0 %v2003
    %2005 = vmatprep.subr.mxu0 0.0
    %v2006 = vand.u32 %v1984, 4294901760
    %2007 = vmatpush1.msra.mxu0 %v2006
    %2008 = vmatprep.subr.mxu0 0.0
    %v2009 = vand.u32 %v1983, 4294901760
    %2010 = vmatpush1.msra.mxu0 %v2009
    %2011 = vmatprep.subr.mxu0 0.0
    %v2012 = vand.u32 %v1982, 4294901760
    %2013 = vmatpush1.msra.mxu0 %v2012
    %2014 = vmatprep.subr.mxu0 0.0
    %v2015 = vand.u32 %v1981, 4294901760
    %2016 = vmatpush1.msra.mxu0 %v2015
    %2017 = vmatprep.subr.mxu0 0.0
    %v2018 = vand.u32 %v1980, 4294901760
    %2019 = vmatpush1.msra.mxu0 %v2018
    %2020 = vmatprep.subr.mxu0 0.0
    %v2021 = vand.u32 %v1979, 4294901760
    %2022 = vmatpush1.msra.mxu0 %v2021
    %2023 = vmatprep.subr.mxu0 0.0
    %v2024 = vand.u32 %v1978, 4294901760
    %2025 = vmatpush1.msra.mxu0 %v2024
    %2026 = vmatprep.subr.mxu0 0.0
    %v2027 = vand.u32 %v1977, 4294901760
    %2028 = vmatpush1.msra.mxu0 %v2027
    %2029 = vmatprep.subr.mxu0 0.0
    %v2030 = vand.u32 %v1976, 4294901760
    %2031 = vmatpush1.msra.mxu0 %v2030
    %2032 = vmatprep.subr.mxu0 0.0
    %v2033 = vand.u32 %v1975, 4294901760
    %2034 = vmatpush1.msra.mxu0 %v2033
    %2035 = vmatprep.subr.mxu0 0.0
    %v2036 = vand.u32 %v1974, 4294901760
    %2037 = vmatpush1.msra.mxu0 %v2036
    %2038 = vmatprep.subr.mxu0 0.0
    %2039 = vmatpush2.msra.mxu0 0.0
    %2040 = vmatprep.subr.mxu0 0.0
    %2041 = vmatpush2.msra.mxu0 0.0
    %2042 = vmatprep.subr.mxu0 0.0
    %2043 = vmatpush2.msra.mxu0 0.0
    %2044 = vmatprep.subr.mxu0 0.0
    %2045 = vmatpush2.msra.mxu0 0.0
    %2046 = vmatprep.subr.mxu0 0.0
    %2047 = vmatpush2.msra.mxu0 0.0
    %2048 = vmatprep.subr.mxu0 0.0
    %2049 = vmatpush2.msra.mxu0 0.0
    %2050 = vmatprep.subr.mxu0 0.0
    %2051 = vmatpush2.msra.mxu0 0.0
    %2052 = vmatprep.subr.mxu0 0.0
    %2053 = vmatpush2.msra.mxu0 0.0
    %2054 = vmatprep.subr.mxu0 0.0
    %2055 = vmatpush2.msra.mxu0 0.0
    %2056 = vmatprep.subr.mxu0 0.0
    %2057 = vmatpush2.msra.mxu0 0.0
    %2058 = vmatprep.subr.mxu0 0.0
    %2059 = vmatpush2.msra.mxu0 0.0
    %2060 = vmatprep.subr.mxu0 0.0
    %2061 = vmatpush2.msra.mxu0 0.0
    %2062 = vmatprep.subr.mxu0 0.0
    %2063 = vmatpush2.msra.mxu0 0.0
    %2064 = vmatprep.subr.mxu0 0.0
    %2065 = vmatpush2.msra.mxu0 0.0
    %2066 = vmatprep.subr.mxu0 0.0
    %2067 = vmatpush2.msra.mxu0 0.0
    %2068 = vmatprep.subr.mxu0 0.0
    %2069 = vmatpush2.msra.mxu0 0.0
    %2070 = vmatprep.mubr.f32.mxu0 0.0
    %v2071 = vand.u32 %v37, 4294901760
    %v2072 = vsub.f32 %v37, %v2071
    %v2073 = vand.u32 %v2072, 4294901760
    %v2074 = vsub.f32 %v2072, %v2073
    %v2075 = vand.u32 %v2074, 4294901760
    %2076 = vmatmul.mubr.f32.gmra.mxu0 %v2075
    %v2077 = vpop.f32.mrf.mxu0
    %v2078 = vadd.f32 0.0, %v2077
    %v2079 = vpop.f32.mrf.mxu0
    %2080 = vdwg.mxu0
    %2081 = vmatprep.subr.mxu0 0.0
    %v2082 = vand.u32 %v1989, 4294901760
    %v2083 = vsub.f32 %v1989, %v2082
    %v2084 = vand.u32 %v2083, 4294901760
    %v2085 = vsub.f32 %v2083, %v2084
    %v2086 = vand.u32 %v2085, 4294901760
    %2087 = vmatpush1.msra.mxu0 %v2086
    %2088 = vmatprep.subr.mxu0 0.0
    %v2089 = vand.u32 %v1988, 4294901760
    %v2090 = vsub.f32 %v1988, %v2089
    %v2091 = vand.u32 %v2090, 4294901760
    %v2092 = vsub.f32 %v2090, %v2091
    %v2093 = vand.u32 %v2092, 4294901760
    %2094 = vmatpush1.msra.mxu0 %v2093
    %2095 = vmatprep.subr.mxu0 0.0
    %v2096 = vand.u32 %v1987, 4294901760
    %v2097 = vsub.f32 %v1987, %v2096
    %v2098 = vand.u32 %v2097, 4294901760
    %v2099 = vsub.f32 %v2097, %v2098
    %v2100 = vand.u32 %v2099, 4294901760
    %2101 = vmatpush1.msra.mxu0 %v2100
    %2102 = vmatprep.subr.mxu0 0.0
    %v2103 = vand.u32 %v1986, 4294901760
    %v2104 = vsub.f32 %v1986, %v2103
    %v2105 = vand.u32 %v2104, 4294901760
    %v2106 = vsub.f32 %v2104, %v2105
    %v2107 = vand.u32 %v2106, 4294901760
    %2108 = vmatpush1.msra.mxu0 %v2107
    %2109 = vmatprep.subr.mxu0 0.0
    %v2110 = vand.u32 %v1985, 4294901760
    %v2111 = vsub.f32 %v1985, %v2110
    %v2112 = vand.u32 %v2111, 4294901760
    %v2113 = vsub.f32 %v2111, %v2112
    %v2114 = vand.u32 %v2113, 4294901760
    %2115 = vmatpush1.msra.mxu0 %v2114
    %2116 = vmatprep.subr.mxu0 0.0
    %v2117 = vand.u32 %v1984, 4294901760
    %v2118 = vsub.f32 %v1984, %v2117
    %v2119 = vand.u32 %v2118, 4294901760
    %v2120 = vsub.f32 %v2118, %v2119
    %v2121 = vand.u32 %v2120, 4294901760
    %2122 = vmatpush1.msra.mxu0 %v2121
    %2123 = vmatprep.subr.mxu0 0.0
    %v2124 = vand.u32 %v1983, 4294901760
    %v2125 = vsub.f32 %v1983, %v2124
    %v2126 = vand.u32 %v2125, 4294901760
    %v2127 = vsub.f32 %v2125, %v2126
    %v2128 = vand.u32 %v2127, 4294901760
    %2129 = vmatpush1.msra.mxu0 %v2128
    %2130 = vmatprep.subr.mxu0 0.0
    %v2131 = vand.u32 %v1982, 4294901760
    %v2132 = vsub.f32 %v1982, %v2131
    %v2133 = vand.u32 %v2132, 4294901760
    %v2134 = vsub.f32 %v2132, %v2133
    %v2135 = vand.u32 %v2134, 4294901760
    %2136 = vmatpush1.msra.mxu0 %v2135
    %2137 = vmatprep.subr.mxu0 0.0
    %v2138 = vand.u32 %v1981, 4294901760
    %v2139 = vsub.f32 %v1981, %v2138
    %v2140 = vand.u32 %v2139, 4294901760
    %v2141 = vsub.f32 %v2139, %v2140
    %v2142 = vand.u32 %v2141, 4294901760
    %2143 = vmatpush1.msra.mxu0 %v2142
    %2144 = vmatprep.subr.mxu0 0.0
    %v2145 = vand.u32 %v1980, 4294901760
    %v2146 = vsub.f32 %v1980, %v2145
    %v2147 = vand.u32 %v2146, 4294901760
    %v2148 = vsub.f32 %v2146, %v2147
    %v2149 = vand.u32 %v2148, 4294901760
    %2150 = vmatpush1.msra.mxu0 %v2149
    %2151 = vmatprep.subr.mxu0 0.0
    %v2152 = vand.u32 %v1979, 4294901760
    %v2153 = vsub.f32 %v1979, %v2152
    %v2154 = vand.u32 %v2153, 4294901760
    %v2155 = vsub.f32 %v2153, %v2154
    %v2156 = vand.u32 %v2155, 4294901760
    %2157 = vmatpush1.msra.mxu0 %v2156
    %2158 = vmatprep.subr.mxu0 0.0
    %v2159 = vand.u32 %v1978, 4294901760
    %v2160 = vsub.f32 %v1978, %v2159
    %v2161 = vand.u32 %v2160, 4294901760
    %v2162 = vsub.f32 %v2160, %v2161
    %v2163 = vand.u32 %v2162, 4294901760
    %2164 = vmatpush1.msra.mxu0 %v2163
    %2165 = vmatprep.subr.mxu0 0.0
    %v2166 = vand.u32 %v1977, 4294901760
    %v2167 = vsub.f32 %v1977, %v2166
    %v2168 = vand.u32 %v2167, 4294901760
    %v2169 = vsub.f32 %v2167, %v2168
    %v2170 = vand.u32 %v2169, 4294901760
    %2171 = vmatpush1.msra.mxu0 %v2170
    %2172 = vmatprep.subr.mxu0 0.0
    %v2173 = vand.u32 %v1976, 4294901760
    %v2174 = vsub.f32 %v1976, %v2173
    %v2175 = vand.u32 %v2174, 4294901760
    %v2176 = vsub.f32 %v2174, %v2175
    %v2177 = vand.u32 %v2176, 4294901760
    %2178 = vmatpush1.msra.mxu0 %v2177
    %2179 = vmatprep.subr.mxu0 0.0
    %v2180 = vand.u32 %v1975, 4294901760
    %v2181 = vsub.f32 %v1975, %v2180
    %v2182 = vand.u32 %v2181, 4294901760
    %v2183 = vsub.f32 %v2181, %v2182
    %v2184 = vand.u32 %v2183, 4294901760
    %2185 = vmatpush1.msra.mxu0 %v2184
    %2186 = vmatprep.subr.mxu0 0.0
    %v2187 = vand.u32 %v1974, 4294901760
    %v2188 = vsub.f32 %v1974, %v2187
    %v2189 = vand.u32 %v2188, 4294901760
    %v2190 = vsub.f32 %v2188, %v2189
    %v2191 = vand.u32 %v2190, 4294901760
    %2192 = vmatpush1.msra.mxu0 %v2191
    %2193 = vmatprep.subr.mxu0 0.0
    %2194 = vmatpush2.msra.mxu0 0.0
    %2195 = vmatprep.subr.mxu0 0.0
    %2196 = vmatpush2.msra.mxu0 0.0
    %2197 = vmatprep.subr.mxu0 0.0
    %2198 = vmatpush2.msra.mxu0 0.0
    %2199 = vmatprep.subr.mxu0 0.0
    %2200 = vmatpush2.msra.mxu0 0.0
    %2201 = vmatprep.subr.mxu0 0.0
    %2202 = vmatpush2.msra.mxu0 0.0
    %2203 = vmatprep.subr.mxu0 0.0
    %2204 = vmatpush2.msra.mxu0 0.0
    %2205 = vmatprep.subr.mxu0 0.0
    %2206 = vmatpush2.msra.mxu0 0.0
    %2207 = vmatprep.subr.mxu0 0.0
    %2208 = vmatpush2.msra.mxu0 0.0
    %2209 = vmatprep.subr.mxu0 0.0
    %2210 = vmatpush2.msra.mxu0 0.0
    %2211 = vmatprep.subr.mxu0 0.0
    %2212 = vmatpush2.msra.mxu0 0.0
    %2213 = vmatprep.subr.mxu0 0.0
    %2214 = vmatpush2.msra.mxu0 0.0
    %2215 = vmatprep.subr.mxu0 0.0
    %2216 = vmatpush2.msra.mxu0 0.0
    %2217 = vmatprep.subr.mxu0 0.0
    %2218 = vmatpush2.msra.mxu0 0.0
    %2219 = vmatprep.subr.mxu0 0.0
    %2220 = vmatpush2.msra.mxu0 0.0
    %2221 = vmatprep.subr.mxu0 0.0
    %2222 = vmatpush2.msra.mxu0 0.0
    %2223 = vmatprep.subr.mxu0 0.0
    %2224 = vmatpush2.msra.mxu0 0.0
    %2225 = vmatprep.mubr.f32.mxu0 0.0
    %v2226 = vand.u32 %v37, 4294901760
    %2227 = vmatmul.mubr.f32.gmra.mxu0 %v2226
    %v2228 = vpop.f32.mrf.mxu0
    %v2229 = vadd.f32 %v2078, %v2228
    %v2230 = vpop.f32.mrf.mxu0
    %2231 = vdwg.mxu0
    %2232 = vmatprep.subr.mxu0 0.0
    %v2233 = vand.u32 %v1989, 4294901760
    %v2234 = vsub.f32 %v1989, %v2233
    %2235 = vmatpush1.msra.mxu0 %v2234
    %2236 = vmatprep.subr.mxu0 0.0
    %v2237 = vand.u32 %v1988, 4294901760
    %v2238 = vsub.f32 %v1988, %v2237
    %2239 = vmatpush1.msra.mxu0 %v2238
    %2240 = vmatprep.subr.mxu0 0.0
    %v2241 = vand.u32 %v1987, 4294901760
    %v2242 = vsub.f32 %v1987, %v2241
    %2243 = vmatpush1.msra.mxu0 %v2242
    %2244 = vmatprep.subr.mxu0 0.0
    %v2245 = vand.u32 %v1986, 4294901760
    %v2246 = vsub.f32 %v1986, %v2245
    %2247 = vmatpush1.msra.mxu0 %v2246
    %2248 = vmatprep.subr.mxu0 0.0
    %v2249 = vand.u32 %v1985, 4294901760
    %v2250 = vsub.f32 %v1985, %v2249
    %2251 = vmatpush1.msra.mxu0 %v2250
    %2252 = vmatprep.subr.mxu0 0.0
    %v2253 = vand.u32 %v1984, 4294901760
    %v2254 = vsub.f32 %v1984, %v2253
    %2255 = vmatpush1.msra.mxu0 %v2254
    %2256 = vmatprep.subr.mxu0 0.0
    %v2257 = vand.u32 %v1983, 4294901760
    %v2258 = vsub.f32 %v1983, %v2257
    %2259 = vmatpush1.msra.mxu0 %v2258
    %2260 = vmatprep.subr.mxu0 0.0
    %v2261 = vand.u32 %v1982, 4294901760
    %v2262 = vsub.f32 %v1982, %v2261
    %2263 = vmatpush1.msra.mxu0 %v2262
    %2264 = vmatprep.subr.mxu0 0.0
    %v2265 = vand.u32 %v1981, 4294901760
    %v2266 = vsub.f32 %v1981, %v2265
    %2267 = vmatpush1.msra.mxu0 %v2266
    %2268 = vmatprep.subr.mxu0 0.0
    %v2269 = vand.u32 %v1980, 4294901760
    %v2270 = vsub.f32 %v1980, %v2269
    %2271 = vmatpush1.msra.mxu0 %v2270
    %2272 = vmatprep.subr.mxu0 0.0
    %v2273 = vand.u32 %v1979, 4294901760
    %v2274 = vsub.f32 %v1979, %v2273
    %2275 = vmatpush1.msra.mxu0 %v2274
    %2276 = vmatprep.subr.mxu0 0.0
    %v2277 = vand.u32 %v1978, 4294901760
    %v2278 = vsub.f32 %v1978, %v2277
    %2279 = vmatpush1.msra.mxu0 %v2278
    %2280 = vmatprep.subr.mxu0 0.0
    %v2281 = vand.u32 %v1977, 4294901760
    %v2282 = vsub.f32 %v1977, %v2281
    %2283 = vmatpush1.msra.mxu0 %v2282
    %2284 = vmatprep.subr.mxu0 0.0
    %v2285 = vand.u32 %v1976, 4294901760
    %v2286 = vsub.f32 %v1976, %v2285
    %2287 = vmatpush1.msra.mxu0 %v2286
    %2288 = vmatprep.subr.mxu0 0.0
    %v2289 = vand.u32 %v1975, 4294901760
    %v2290 = vsub.f32 %v1975, %v2289
    %2291 = vmatpush1.msra.mxu0 %v2290
    %2292 = vmatprep.subr.mxu0 0.0
    %v2293 = vand.u32 %v1974, 4294901760
    %v2294 = vsub.f32 %v1974, %v2293
    %2295 = vmatpush1.msra.mxu0 %v2294
    %2296 = vmatprep.subr.mxu0 0.0
    %2297 = vmatpush2.msra.mxu0 0.0
    %2298 = vmatprep.subr.mxu0 0.0
    %2299 = vmatpush2.msra.mxu0 0.0
    %2300 = vmatprep.subr.mxu0 0.0
    %2301 = vmatpush2.msra.mxu0 0.0
    %2302 = vmatprep.subr.mxu0 0.0
    %2303 = vmatpush2.msra.mxu0 0.0
    %2304 = vmatprep.subr.mxu0 0.0
    %2305 = vmatpush2.msra.mxu0 0.0
    %2306 = vmatprep.subr.mxu0 0.0
    %2307 = vmatpush2.msra.mxu0 0.0
    %2308 = vmatprep.subr.mxu0 0.0
    %2309 = vmatpush2.msra.mxu0 0.0
    %2310 = vmatprep.subr.mxu0 0.0
    %2311 = vmatpush2.msra.mxu0 0.0
    %2312 = vmatprep.subr.mxu0 0.0
    %2313 = vmatpush2.msra.mxu0 0.0
    %2314 = vmatprep.subr.mxu0 0.0
    %2315 = vmatpush2.msra.mxu0 0.0
    %2316 = vmatprep.subr.mxu0 0.0
    %2317 = vmatpush2.msra.mxu0 0.0
    %2318 = vmatprep.subr.mxu0 0.0
    %2319 = vmatpush2.msra.mxu0 0.0
    %2320 = vmatprep.subr.mxu0 0.0
    %2321 = vmatpush2.msra.mxu0 0.0
    %2322 = vmatprep.subr.mxu0 0.0
    %2323 = vmatpush2.msra.mxu0 0.0
    %2324 = vmatprep.subr.mxu0 0.0
    %2325 = vmatpush2.msra.mxu0 0.0
    %2326 = vmatprep.subr.mxu0 0.0
    %2327 = vmatpush2.msra.mxu0 0.0
    %2328 = vmatprep.mubr.f32.mxu0 0.0
    %v2329 = vand.u32 %v37, 4294901760
    %v2330 = vsub.f32 %v37, %v2329
    %2331 = vmatmul.mubr.f32.gmra.mxu0 %v2330
    %v2332 = vpop.f32.mrf.mxu0
    %v2333 = vadd.f32 %v2229, %v2332
    %v2334 = vpop.f32.mrf.mxu0
    %2335 = vdwg.mxu0
    %2336 = vmatprep.subr.mxu0 0.0
    %v2337 = vand.u32 %v1989, 4294901760
    %2338 = vmatpush1.msra.mxu0 %v2337
    %2339 = vmatprep.subr.mxu0 0.0
    %v2340 = vand.u32 %v1988, 4294901760
    %2341 = vmatpush1.msra.mxu0 %v2340
    %2342 = vmatprep.subr.mxu0 0.0
    %v2343 = vand.u32 %v1987, 4294901760
    %2344 = vmatpush1.msra.mxu0 %v2343
    %2345 = vmatprep.subr.mxu0 0.0
    %v2346 = vand.u32 %v1986, 4294901760
    %2347 = vmatpush1.msra.mxu0 %v2346
    %2348 = vmatprep.subr.mxu0 0.0
    %v2349 = vand.u32 %v1985, 4294901760
    %2350 = vmatpush1.msra.mxu0 %v2349
    %2351 = vmatprep.subr.mxu0 0.0
    %v2352 = vand.u32 %v1984, 4294901760
    %2353 = vmatpush1.msra.mxu0 %v2352
    %2354 = vmatprep.subr.mxu0 0.0
    %v2355 = vand.u32 %v1983, 4294901760
    %2356 = vmatpush1.msra.mxu0 %v2355
    %2357 = vmatprep.subr.mxu0 0.0
    %v2358 = vand.u32 %v1982, 4294901760
    %2359 = vmatpush1.msra.mxu0 %v2358
    %2360 = vmatprep.subr.mxu0 0.0
    %v2361 = vand.u32 %v1981, 4294901760
    %2362 = vmatpush1.msra.mxu0 %v2361
    %2363 = vmatprep.subr.mxu0 0.0
    %v2364 = vand.u32 %v1980, 4294901760
    %2365 = vmatpush1.msra.mxu0 %v2364
    %2366 = vmatprep.subr.mxu0 0.0
    %v2367 = vand.u32 %v1979, 4294901760
    %2368 = vmatpush1.msra.mxu0 %v2367
    %2369 = vmatprep.subr.mxu0 0.0
    %v2370 = vand.u32 %v1978, 4294901760
    %2371 = vmatpush1.msra.mxu0 %v2370
    %2372 = vmatprep.subr.mxu0 0.0
    %v2373 = vand.u32 %v1977, 4294901760
    %2374 = vmatpush1.msra.mxu0 %v2373
    %2375 = vmatprep.subr.mxu0 0.0
    %v2376 = vand.u32 %v1976, 4294901760
    %2377 = vmatpush1.msra.mxu0 %v2376
    %2378 = vmatprep.subr.mxu0 0.0
    %v2379 = vand.u32 %v1975, 4294901760
    %2380 = vmatpush1.msra.mxu0 %v2379
    %2381 = vmatprep.subr.mxu0 0.0
    %v2382 = vand.u32 %v1974, 4294901760
    %2383 = vmatpush1.msra.mxu0 %v2382
    %2384 = vmatprep.subr.mxu0 0.0
    %2385 = vmatpush2.msra.mxu0 0.0
    %2386 = vmatprep.subr.mxu0 0.0
    %2387 = vmatpush2.msra.mxu0 0.0
    %2388 = vmatprep.subr.mxu0 0.0
    %2389 = vmatpush2.msra.mxu0 0.0
    %2390 = vmatprep.subr.mxu0 0.0
    %2391 = vmatpush2.msra.mxu0 0.0
    %2392 = vmatprep.subr.mxu0 0.0
    %2393 = vmatpush2.msra.mxu0 0.0
    %2394 = vmatprep.subr.mxu0 0.0
    %2395 = vmatpush2.msra.mxu0 0.0
    %2396 = vmatprep.subr.mxu0 0.0
    %2397 = vmatpush2.msra.mxu0 0.0
    %2398 = vmatprep.subr.mxu0 0.0
    %2399 = vmatpush2.msra.mxu0 0.0
    %2400 = vmatprep.subr.mxu0 0.0
    %2401 = vmatpush2.msra.mxu0 0.0
    %2402 = vmatprep.subr.mxu0 0.0
    %2403 = vmatpush2.msra.mxu0 0.0
    %2404 = vmatprep.subr.mxu0 0.0
    %2405 = vmatpush2.msra.mxu0 0.0
    %2406 = vmatprep.subr.mxu0 0.0
    %2407 = vmatpush2.msra.mxu0 0.0
    %2408 = vmatprep.subr.mxu0 0.0
    %2409 = vmatpush2.msra.mxu0 0.0
    %2410 = vmatprep.subr.mxu0 0.0
    %2411 = vmatpush2.msra.mxu0 0.0
    %2412 = vmatprep.subr.mxu0 0.0
    %2413 = vmatpush2.msra.mxu0 0.0
    %2414 = vmatprep.subr.mxu0 0.0
    %2415 = vmatpush2.msra.mxu0 0.0
    %2416 = vmatprep.mubr.f32.mxu0 0.0
    %v2417 = vand.u32 %v37, 4294901760
    %v2418 = vsub.f32 %v37, %v2417
    %v2419 = vand.u32 %v2418, 4294901760
    %2420 = vmatmul.mubr.f32.gmra.mxu0 %v2419
    %v2421 = vpop.f32.mrf.mxu0
    %v2422 = vadd.f32 %v2333, %v2421
    %v2423 = vpop.f32.mrf.mxu0
    %2424 = vdwg.mxu0
    %2425 = vmatprep.subr.mxu0 0.0
    %v2426 = vand.u32 %v1989, 4294901760
    %v2427 = vsub.f32 %v1989, %v2426
    %v2428 = vand.u32 %v2427, 4294901760
    %2429 = vmatpush1.msra.mxu0 %v2428
    %2430 = vmatprep.subr.mxu0 0.0
    %v2431 = vand.u32 %v1988, 4294901760
    %v2432 = vsub.f32 %v1988, %v2431
    %v2433 = vand.u32 %v2432, 4294901760
    %2434 = vmatpush1.msra.mxu0 %v2433
    %2435 = vmatprep.subr.mxu0 0.0
    %v2436 = vand.u32 %v1987, 4294901760
    %v2437 = vsub.f32 %v1987, %v2436
    %v2438 = vand.u32 %v2437, 4294901760
    %2439 = vmatpush1.msra.mxu0 %v2438
    %2440 = vmatprep.subr.mxu0 0.0
    %v2441 = vand.u32 %v1986, 4294901760
    %v2442 = vsub.f32 %v1986, %v2441
    %v2443 = vand.u32 %v2442, 4294901760
    %2444 = vmatpush1.msra.mxu0 %v2443
    %2445 = vmatprep.subr.mxu0 0.0
    %v2446 = vand.u32 %v1985, 4294901760
    %v2447 = vsub.f32 %v1985, %v2446
    %v2448 = vand.u32 %v2447, 4294901760
    %2449 = vmatpush1.msra.mxu0 %v2448
    %2450 = vmatprep.subr.mxu0 0.0
    %v2451 = vand.u32 %v1984, 4294901760
    %v2452 = vsub.f32 %v1984, %v2451
    %v2453 = vand.u32 %v2452, 4294901760
    %2454 = vmatpush1.msra.mxu0 %v2453
    %2455 = vmatprep.subr.mxu0 0.0
    %v2456 = vand.u32 %v1983, 4294901760
    %v2457 = vsub.f32 %v1983, %v2456
    %v2458 = vand.u32 %v2457, 4294901760
    %2459 = vmatpush1.msra.mxu0 %v2458
    %2460 = vmatprep.subr.mxu0 0.0
    %v2461 = vand.u32 %v1982, 4294901760
    %v2462 = vsub.f32 %v1982, %v2461
    %v2463 = vand.u32 %v2462, 4294901760
    %2464 = vmatpush1.msra.mxu0 %v2463
    %2465 = vmatprep.subr.mxu0 0.0
    %v2466 = vand.u32 %v1981, 4294901760
    %v2467 = vsub.f32 %v1981, %v2466
    %v2468 = vand.u32 %v2467, 4294901760
    %2469 = vmatpush1.msra.mxu0 %v2468
    %2470 = vmatprep.subr.mxu0 0.0
    %v2471 = vand.u32 %v1980, 4294901760
    %v2472 = vsub.f32 %v1980, %v2471
    %v2473 = vand.u32 %v2472, 4294901760
    %2474 = vmatpush1.msra.mxu0 %v2473
    %2475 = vmatprep.subr.mxu0 0.0
    %v2476 = vand.u32 %v1979, 4294901760
    %v2477 = vsub.f32 %v1979, %v2476
    %v2478 = vand.u32 %v2477, 4294901760
    %2479 = vmatpush1.msra.mxu0 %v2478
    %2480 = vmatprep.subr.mxu0 0.0
    %v2481 = vand.u32 %v1978, 4294901760
    %v2482 = vsub.f32 %v1978, %v2481
    %v2483 = vand.u32 %v2482, 4294901760
    %2484 = vmatpush1.msra.mxu0 %v2483
    %2485 = vmatprep.subr.mxu0 0.0
    %v2486 = vand.u32 %v1977, 4294901760
    %v2487 = vsub.f32 %v1977, %v2486
    %v2488 = vand.u32 %v2487, 4294901760
    %2489 = vmatpush1.msra.mxu0 %v2488
    %2490 = vmatprep.subr.mxu0 0.0
    %v2491 = vand.u32 %v1976, 4294901760
    %v2492 = vsub.f32 %v1976, %v2491
    %v2493 = vand.u32 %v2492, 4294901760
    %2494 = vmatpush1.msra.mxu0 %v2493
    %2495 = vmatprep.subr.mxu0 0.0
    %v2496 = vand.u32 %v1975, 4294901760
    %v2497 = vsub.f32 %v1975, %v2496
    %v2498 = vand.u32 %v2497, 4294901760
    %2499 = vmatpush1.msra.mxu0 %v2498
    %2500 = vmatprep.subr.mxu0 0.0
    %v2501 = vand.u32 %v1974, 4294901760
    %v2502 = vsub.f32 %v1974, %v2501
    %v2503 = vand.u32 %v2502, 4294901760
    %2504 = vmatpush1.msra.mxu0 %v2503
    %2505 = vmatprep.subr.mxu0 0.0
    %2506 = vmatpush2.msra.mxu0 0.0
    %2507 = vmatprep.subr.mxu0 0.0
    %2508 = vmatpush2.msra.mxu0 0.0
    %2509 = vmatprep.subr.mxu0 0.0
    %2510 = vmatpush2.msra.mxu0 0.0
    %2511 = vmatprep.subr.mxu0 0.0
    %2512 = vmatpush2.msra.mxu0 0.0
    %2513 = vmatprep.subr.mxu0 0.0
    %2514 = vmatpush2.msra.mxu0 0.0
    %2515 = vmatprep.subr.mxu0 0.0
    %2516 = vmatpush2.msra.mxu0 0.0
    %2517 = vmatprep.subr.mxu0 0.0
    %2518 = vmatpush2.msra.mxu0 0.0
    %2519 = vmatprep.subr.mxu0 0.0
    %2520 = vmatpush2.msra.mxu0 0.0
    %2521 = vmatprep.subr.mxu0 0.0
    %2522 = vmatpush2.msra.mxu0 0.0
    %2523 = vmatprep.subr.mxu0 0.0
    %2524 = vmatpush2.msra.mxu0 0.0
    %2525 = vmatprep.subr.mxu0 0.0
    %2526 = vmatpush2.msra.mxu0 0.0
    %2527 = vmatprep.subr.mxu0 0.0
    %2528 = vmatpush2.msra.mxu0 0.0
    %2529 = vmatprep.subr.mxu0 0.0
    %2530 = vmatpush2.msra.mxu0 0.0
    %2531 = vmatprep.subr.mxu0 0.0
    %2532 = vmatpush2.msra.mxu0 0.0
    %2533 = vmatprep.subr.mxu0 0.0
    %2534 = vmatpush2.msra.mxu0 0.0
    %2535 = vmatprep.subr.mxu0 0.0
    %2536 = vmatpush2.msra.mxu0 0.0
    %2537 = vmatprep.mubr.f32.mxu0 0.0
    %v2538 = vand.u32 %v37, 4294901760
    %2539 = vmatmul.mubr.f32.gmra.mxu0 %v2538
    %v2540 = vpop.f32.mrf.mxu0
    %v2541 = vadd.f32 %v2422, %v2540
    %v2542 = vpop.f32.mrf.mxu0
    %2543 = vdwg.mxu0
    %2544 = vmatprep.subr.mxu0 0.0
    %v2545 = vand.u32 %v1989, 4294901760
    %2546 = vmatpush1.msra.mxu0 %v2545
    %2547 = vmatprep.subr.mxu0 0.0
    %v2548 = vand.u32 %v1988, 4294901760
    %2549 = vmatpush1.msra.mxu0 %v2548
    %2550 = vmatprep.subr.mxu0 0.0
    %v2551 = vand.u32 %v1987, 4294901760
    %2552 = vmatpush1.msra.mxu0 %v2551
    %2553 = vmatprep.subr.mxu0 0.0
    %v2554 = vand.u32 %v1986, 4294901760
    %2555 = vmatpush1.msra.mxu0 %v2554
    %2556 = vmatprep.subr.mxu0 0.0
    %v2557 = vand.u32 %v1985, 4294901760
    %2558 = vmatpush1.msra.mxu0 %v2557
    %2559 = vmatprep.subr.mxu0 0.0
    %v2560 = vand.u32 %v1984, 4294901760
    %2561 = vmatpush1.msra.mxu0 %v2560
    %2562 = vmatprep.subr.mxu0 0.0
    %v2563 = vand.u32 %v1983, 4294901760
    %2564 = vmatpush1.msra.mxu0 %v2563
    %2565 = vmatprep.subr.mxu0 0.0
    %v2566 = vand.u32 %v1982, 4294901760
    %2567 = vmatpush1.msra.mxu0 %v2566
    %2568 = vmatprep.subr.mxu0 0.0
    %v2569 = vand.u32 %v1981, 4294901760
    %2570 = vmatpush1.msra.mxu0 %v2569
    %2571 = vmatprep.subr.mxu0 0.0
    %v2572 = vand.u32 %v1980, 4294901760
    %2573 = vmatpush1.msra.mxu0 %v2572
    %2574 = vmatprep.subr.mxu0 0.0
    %v2575 = vand.u32 %v1979, 4294901760
    %2576 = vmatpush1.msra.mxu0 %v2575
    %2577 = vmatprep.subr.mxu0 0.0
    %v2578 = vand.u32 %v1978, 4294901760
    %2579 = vmatpush1.msra.mxu0 %v2578
    %2580 = vmatprep.subr.mxu0 0.0
    %v2581 = vand.u32 %v1977, 4294901760
    %2582 = vmatpush1.msra.mxu0 %v2581
    %2583 = vmatprep.subr.mxu0 0.0
    %v2584 = vand.u32 %v1976, 4294901760
    %2585 = vmatpush1.msra.mxu0 %v2584
    %2586 = vmatprep.subr.mxu0 0.0
    %v2587 = vand.u32 %v1975, 4294901760
    %2588 = vmatpush1.msra.mxu0 %v2587
    %2589 = vmatprep.subr.mxu0 0.0
    %v2590 = vand.u32 %v1974, 4294901760
    %2591 = vmatpush1.msra.mxu0 %v2590
    %2592 = vmatprep.subr.mxu0 0.0
    %2593 = vmatpush2.msra.mxu0 0.0
    %2594 = vmatprep.subr.mxu0 0.0
    %2595 = vmatpush2.msra.mxu0 0.0
    %2596 = vmatprep.subr.mxu0 0.0
    %2597 = vmatpush2.msra.mxu0 0.0
    %2598 = vmatprep.subr.mxu0 0.0
    %2599 = vmatpush2.msra.mxu0 0.0
    %2600 = vmatprep.subr.mxu0 0.0
    %2601 = vmatpush2.msra.mxu0 0.0
    %2602 = vmatprep.subr.mxu0 0.0
    %2603 = vmatpush2.msra.mxu0 0.0
    %2604 = vmatprep.subr.mxu0 0.0
    %2605 = vmatpush2.msra.mxu0 0.0
    %2606 = vmatprep.subr.mxu0 0.0
    %2607 = vmatpush2.msra.mxu0 0.0
    %2608 = vmatprep.subr.mxu0 0.0
    %2609 = vmatpush2.msra.mxu0 0.0
    %2610 = vmatprep.subr.mxu0 0.0
    %2611 = vmatpush2.msra.mxu0 0.0
    %2612 = vmatprep.subr.mxu0 0.0
    %2613 = vmatpush2.msra.mxu0 0.0
    %2614 = vmatprep.subr.mxu0 0.0
    %2615 = vmatpush2.msra.mxu0 0.0
    %2616 = vmatprep.subr.mxu0 0.0
    %2617 = vmatpush2.msra.mxu0 0.0
    %2618 = vmatprep.subr.mxu0 0.0
    %2619 = vmatpush2.msra.mxu0 0.0
    %2620 = vmatprep.subr.mxu0 0.0
    %2621 = vmatpush2.msra.mxu0 0.0
    %2622 = vmatprep.subr.mxu0 0.0
    %2623 = vmatpush2.msra.mxu0 0.0
    %2624 = vmatprep.mubr.f32.mxu0 0.0
    %v2625 = vand.u32 %v37, 4294901760
    %2626 = vmatmul.mubr.f32.gmra.mxu0 %v2625
    %v2627 = vpop.f32.mrf.mxu0
    %v2628 = vadd.f32 %v2541, %v2627
    %v2629 = vpop.f32.mrf.mxu0
    %2630 = vdwg.mxu0
    %v2631 = vmul.f32 %v1965, %v1965
    %v2632 = vsub.f32 %v2628, %v2631
    %v2633 = vadd.f32 %v2632, 0.01
    %v2634 = vrsqrt.pop %v2633
    %v2635 = vmul.f32 %v2634, %v1971
    %2636 = vst [vmem:[#allocation2] sm:$0xff] %v2635
    // Predicated region
    $region18: #{tpu_custom_call.1} parent=1 // pred_check
      _
    $region19: #{tpu_custom_call.1} parent=1 // pred_check_branch
      %2638 = sbr.rel (0) target = $region21
    $region20: #{tpu_custom_call.1} parent=1 // pred_region
      %s2640 = ssub.s32 128, 128
      %2641 = vsyncadd [#allocation3], %s2640
      %s2643 = sshll.u32 [#allocation2], 4
      %s2644 = int_to_ptr.vmem [resolvable:$true] %s2643
      %2646 = dma.vmem_to_hbm [thread:$0]  %s2644, 128, %s4, [#allocation3]
    $region21: #{tpu_custom_call.1} parent=1 // pred_fallthru
      _
    // Predicated region
    $region22: #{tpu_custom_call.1} parent=1 // pred_check
      _
    $region23: #{tpu_custom_call.1} parent=1 // pred_check_branch
      %2648 = sbr.rel (0) target = $region25
    $region24: #{tpu_custom_call.1} parent=1 // pred_region
      %2649 = dma.done [#allocation3], 128
    $region25: #{tpu_custom_call.1} parent=1 // pred_fallthru
      _
    %2650 = vsyncpa [#allocation3], 1

</llo_original>
